<compile_context>
chip_gen: v7x
topology: tpu7x:2x2x1
jax: 0.10.0
libtpu: 0.0.40
codegen_flags: <defaults>
</compile_context>

<pallas_src>
import numpy as np

import jax
import jax.numpy as jnp
from jax.experimental import pallas as pl
from jax.experimental.pallas import tpu as pltpu


def _pad8(v):
    return ((v + 7) // 8) * 8


# ----------------------------- fused Pallas kernel -------------------------

def lenet5_kernel(x_ref, w1s_ref, b1_ref, l1_ref, r1s_ref,
                  w2s_ref, b2_ref, l2_ref, r2s_ref, wfc_ref, bfc_ref,
                  o_ref,
                  lhs1_ref, p1_ref, lhs2_ref, fc_ref):
    f32 = jnp.float32
    nb = x_ref.shape[0]

    # ---- conv1: build im2col-lite LHS (rows = (n, oh), 5 window chunks of 32
    #      lanes; zero rows/cols provide the padding=1 border, the W-shift is
    #      folded into w1s), then ONE GEMM against the K-stacked banded weight.
    lhs1_ref[...] = jnp.zeros_like(lhs1_ref)
    for n in range(nb):
        for i in range(5):
            r0 = max(0, 1 - i)            # first output row with a valid source row
            r1 = min(26, 29 - i)          # one-past-last valid output row
            s0 = r0 + i - 1               # first source image row
            lhs1_ref[n * 26 + r0:n * 26 + r1, i * 32:i * 32 + 28] = (
                x_ref[n, 0, s0:s0 + (r1 - r0), :])
    y1 = jnp.dot(lhs1_ref[...], w1s_ref[...],
                 preferred_element_type=f32) + b1_ref[...]       # (m1, 6*26)

    # ---- maxpool1 2x2/2 + channel packing: 4 lane-dense selection GEMMs ----
    rm = jnp.maximum(jnp.dot(l1_ref[0], y1, preferred_element_type=f32),
                     jnp.dot(l1_ref[1], y1, preferred_element_type=f32))
    p1 = jnp.maximum(jnp.dot(rm, r1s_ref[0], preferred_element_type=f32),
                     jnp.dot(rm, r1s_ref[1], preferred_element_type=f32))
    p1_ref[0:nb * 13, :] = p1             # rows (n, k), cols (ci*13 + l), 128 lanes

    # ---- conv2: im2col-lite LHS (5 window chunks at 128-lane offsets) + ONE GEMM
    lhs2_ref[...] = jnp.zeros_like(lhs2_ref)
    for n in range(nb):
        for i in range(5):
            lhs2_ref[n * 9:n * 9 + 9, i * 128:(i + 1) * 128] = (
                p1_ref[n * 13 + i:n * 13 + i + 9, :])
    y2 = jnp.dot(lhs2_ref[...], w2s_ref[...],
                 preferred_element_type=f32) + b2_ref[...]       # (m2, 16*9)

    # ---- maxpool2 2x2/2 (floor): 4 selection GEMMs --------------------------
    rm2 = jnp.maximum(jnp.dot(l2_ref[0], y2, preferred_element_type=f32),
                      jnp.dot(l2_ref[1], y2, preferred_element_type=f32))
    p2 = jnp.maximum(jnp.dot(rm2, r2s_ref[0], preferred_element_type=f32),
                     jnp.dot(rm2, r2s_ref[1], preferred_element_type=f32))
    # p2: rows (n, oh2) [nb*4 used], cols (oc*4 + ow2) = 64

    # ---- flatten to one lane-dense 256-wide row per image, then the
    #      pre-composed fc1@fc2@fc3 stack as ONE GEMM -------------------------
    fc_ref[...] = jnp.zeros_like(fc_ref)
    for n in range(nb):
        for k in range(4):
            fc_ref[n:n + 1, k * 64:(k + 1) * 64] = p2[n * 4 + k:n * 4 + k + 1, :]
    out = jnp.dot(fc_ref[...], wfc_ref[...],
                  preferred_element_type=f32) + bfc_ref[...]
    o_ref[...] = out[0:nb, :]


_VMEM = pl.BlockSpec(memory_space=pltpu.MemorySpace.VMEM)


def lenet5_forward(x, prepared):
    (w1s, b1r, l1b, r1s, w2s, b2r, l2b, r2s, wfc, bfcr) = prepared
    nb = x.shape[0]
    assert x.shape[1:] == (1, 28, 28)
    m1 = l1b.shape[2]   # padded conv1-GEMM rows = pad8(nb*26)
    m2 = l2b.shape[2]   # padded conv2-GEMM rows = pad8(nb*9)
    return pl.pallas_call(
        lenet5_kernel,
        out_shape=jax.ShapeDtypeStruct((nb, 10), jnp.float32),
        in_specs=[_VMEM] * 11,
        out_specs=_VMEM,
        scratch_shapes=[
            pltpu.VMEM((m1, 5 * 32), jnp.float32),             # conv1 im2col-lite LHS
            pltpu.VMEM((_pad8(nb * 13), 128), jnp.float32),    # pool1 (channel-packed)
            pltpu.VMEM((m2, 5 * 128), jnp.float32),            # conv2 im2col-lite LHS
            pltpu.VMEM((_pad8(nb * 4), 256), jnp.float32),     # flattened features
        ],
    )(x, w1s, b1r, l1b, r1s, w2s, b2r, l2b, r2s, wfc, bfcr)


# ------------------- one-time parameter repacking (hoisted) ----------------

def prepare_params(params, batch=2):
    """Repack PyTorch-layout parameters into MXU-friendly kernel operands.

    Called ONCE at init time (outside the jitted forward): all transposes,
    band construction, selection matrices, flatten-folding and the exact
    fc1@fc2@fc3 composition live here, not in the hot path.
    """
    (w1, b1, w2, b2, fw1, fb1, fw2, fb2, fw3, fb3) = [
        np.asarray(p, np.float64) for p in params]

    m1 = _pad8(batch * 26)     # conv1 GEMM rows (batch folded into M)
    m2 = _pad8(batch * 9)      # conv2 GEMM rows

    # conv1 stacked banded weight, K = 5 windows x 32 lanes.  The image is
    # stored un-shifted at lane offset i*32 inside each window chunk, so the
    # padding=1 column shift is folded here:  j = c - ow + 1.
    W1s = np.zeros((5 * 32, 6 * 26))
    for i in range(5):
        for oc in range(6):
            for ow in range(26):
                for j in range(5):
                    c = ow + j - 1
                    if 0 <= c < 28:
                        W1s[i * 32 + c, oc * 26 + ow] = w1[oc, 0, i, j]
    b1row = np.repeat(b1, 26)[None, :]                        # (1, 156)

    # pool1: batch-folded row-parity selection + a column-parity selection that
    # simultaneously packs the 6 channels into one lane-dense 128-wide block.
    L1b = np.zeros((2, batch * 13, m1))
    for p in range(2):
        for n in range(batch):
            for k in range(13):
                L1b[p, n * 13 + k, n * 26 + 2 * k + p] = 1.0
    R1s = np.zeros((2, 6 * 26, 128))
    for q in range(2):
        for oc in range(6):
            for l in range(13):
                R1s[q, oc * 26 + 2 * l + q, oc * 13 + l] = 1.0

    # conv2 stacked banded weight, K = 5 windows x 128 lanes (channel-packed
    # pool1 layout: column ci*13 + l inside each window chunk).
    W2s = np.zeros((5 * 128, 16 * 9))
    for i in range(5):
        for ci in range(6):
            for oc in range(16):
                for ow in range(9):
                    for j in range(5):
                        W2s[i * 128 + ci * 13 + ow + j, oc * 9 + ow] = w2[oc, ci, i, j]
    b2row = np.repeat(b2, 9)[None, :]                         # (1, 144)

    # pool2 selections (batch-folded rows; columns stay channel-packed 16*4).
    L2b = np.zeros((2, batch * 4, m2))
    for p in range(2):
        for n in range(batch):
            for k in range(4):
                L2b[p, n * 4 + k, n * 9 + 2 * k + p] = 1.0
    R2s = np.zeros((2, 16 * 9, 16 * 4))
    for q in range(2):
        for oc in range(16):
            for l in range(4):
                R2s[q, oc * 9 + 2 * l + q, oc * 4 + l] = 1.0

    # FC stack pre-composed in float64 (exact: no activations between Linears),
    # with the NCHW flatten AND the kernel's (row-k2, channel, col) packing
    # folded into the weight:  kernel index g = k2*64 + oc*4 + ow2,
    # torch flatten index      f = oc*16 + k2*4 + ow2.
    Wfull = fw1.T @ fw2.T @ fw3.T                              # (256, 10)
    bfull = fb1 @ fw2.T @ fw3.T + fb2 @ fw3.T + fb3            # (10,)
    Wfc = Wfull.reshape(16, 4, 4, 10).transpose(1, 0, 2, 3).reshape(256, 10)

    prepared = (W1s, b1row, L1b, R1s, W2s, b2row, L2b, R2s, Wfc, bfull[None, :])
    return tuple(jnp.asarray(np.asarray(p, np.float32)) for p in prepared)


# ----------------------------- init & reference ----------------------------

def init_params(key):
    """Deterministic init mimicking PyTorch's default U(-1/sqrt(fan_in), ...)."""
    ks = jax.random.split(key, 10)

    def u(k, shape, fan_in):
        bound = 1.0 / (fan_in ** 0.5)
        return jax.random.uniform(k, shape, jnp.float32, -bound, bound)

    w1 = u(ks[0], (6, 1, 5, 5), 1 * 5 * 5);   b1 = u(ks[1], (6,), 1 * 5 * 5)
    w2 = u(ks[2], (16, 6, 5, 5), 6 * 5 * 5);  b2 = u(ks[3], (16,), 6 * 5 * 5)
    fw1 = u(ks[4], (120, 256), 256);          fb1 = u(ks[5], (120,), 256)
    fw2 = u(ks[6], (84, 120), 120);           fb2 = u(ks[7], (84,), 120)
    fw3 = u(ks[8], (10, 84), 84);             fb3 = u(ks[9], (10,), 84)
    return (w1, b1, w2, b2, fw1, fb1, fw2, fb2, fw3, fb3)


def lenet5_reference(x, params):
    """Plain-JAX reference (matches the PyTorch module: no activations)."""
    (w1, b1, w2, b2, fw1, fb1, fw2, fb2, fw3, fb3) = params
    hp = jax.lax.Precision.HIGHEST
    out = jax.lax.conv_general_dilated(
        x, w1, (1, 1), [(1, 1), (1, 1)],
        dimension_numbers=("NCHW", "OIHW", "NCHW"), precision=hp)
    out = out + b1[None, :, None, None]
    out = jax.lax.reduce_window(out, -jnp.inf, jax.lax.max,
                                (1, 1, 2, 2), (1, 1, 2, 2), "VALID")
    out = jax.lax.conv_general_dilated(
        out, w2, (1, 1), [(0, 0), (0, 0)],
        dimension_numbers=("NCHW", "OIHW", "NCHW"), precision=hp)
    out = out + b2[None, :, None, None]
    out = jax.lax.reduce_window(out, -jnp.inf, jax.lax.max,
                                (1, 1, 2, 2), (1, 1, 2, 2), "VALID")
    out = out.reshape(out.shape[0], -1)
    out = jnp.dot(out, fw1.T, precision=hp) + fb1
    out = jnp.dot(out, fw2.T, precision=hp) + fb2
    out = jnp.dot(out, fw3.T, precision=hp) + fb3
    return out


if __name__ == "__main__":
    key = jax.random.PRNGKey(0)
    pkey, xkey = jax.random.split(key)
    params = init_params(pkey)
    prepared = prepare_params(params, batch=2)   # one-time weight repack, outside the jit

    # batch=2, 1 channel, 28x28 (so the flattened conv output is 16*4*4 = 256)
    x = jax.random.normal(xkey, (2, 1, 28, 28), dtype=jnp.float32)

    fwd = jax.jit(lenet5_forward)
    out = jax.block_until_ready(fwd(x, prepared))
    assert out.shape == (2, 10), out.shape

    ref = jax.block_until_ready(lenet5_reference(x, params))
    assert jnp.allclose(out, ref, rtol=1e-4, atol=1e-4), (out, ref)
    print("KERNEL_OK")
</pallas_src>

<mosaic_0001>
module attributes {stable_mosaic.version = 11 : i64} {
  func.func @lenet5_kernel(%arg0: memref<2x1x28x28xf32, #tpu.memory_space<vmem>>, %arg1: memref<160x156xf32, #tpu.memory_space<vmem>>, %arg2: memref<1x156xf32, #tpu.memory_space<vmem>>, %arg3: memref<2x26x56xf32, #tpu.memory_space<vmem>>, %arg4: memref<2x156x128xf32, #tpu.memory_space<vmem>>, %arg5: memref<640x144xf32, #tpu.memory_space<vmem>>, %arg6: memref<1x144xf32, #tpu.memory_space<vmem>>, %arg7: memref<2x8x24xf32, #tpu.memory_space<vmem>>, %arg8: memref<2x144x64xf32, #tpu.memory_space<vmem>>, %arg9: memref<256x10xf32, #tpu.memory_space<vmem>>, %arg10: memref<1x10xf32, #tpu.memory_space<vmem>>, %arg11: memref<2x10xf32, #tpu.memory_space<vmem>>, %arg12: memref<56x160xf32, #tpu.memory_space<vmem>>, %arg13: memref<32x128xf32, #tpu.memory_space<vmem>>, %arg14: memref<24x640xf32, #tpu.memory_space<vmem>>, %arg15: memref<8x256xf32, #tpu.memory_space<vmem>>) attributes {dimension_semantics = [], scalar_prefetch = 0 : i64, scratch_operands = 4 : i64, tpu.core_type = #tpu.core_type<tc>} {
    %cst = arith.constant 0.000000e+00 : f32
    %0 = vector.broadcast %cst : f32 to vector<56x160xf32>
    %c0 = arith.constant 0 : index
    %c0_0 = arith.constant 0 : index
    %1 = vector.load %arg12[%c0, %c0_0] : memref<56x160xf32, #tpu.memory_space<vmem>>, vector<56x160xf32>
    tpu.vector_store %arg12[%c0, %c0_0], %0 {strides = array<i32>} : memref<56x160xf32, #tpu.memory_space<vmem>>, vector<56x160xf32>,
    %c0_1 = arith.constant 0 : index
    %c0_2 = arith.constant 0 : index
    %c0_3 = arith.constant 0 : index
    %c0_4 = arith.constant 0 : index
    %2 = vector.load %arg0[%c0_1, %c0_2, %c0_3, %c0_4] : memref<2x1x28x28xf32, #tpu.memory_space<vmem>>, vector<1x1x25x28xf32>
    %3 = vector.shape_cast %2 : vector<1x1x25x28xf32> to vector<25x28xf32>
    %c1 = arith.constant 1 : index
    %c0_5 = arith.constant 0 : index
    %4 = vector.load %arg12[%c1, %c0_5] : memref<56x160xf32, #tpu.memory_space<vmem>>, vector<25x28xf32>
    tpu.vector_store %arg12[%c1, %c0_5], %3 {strides = array<i32>} : memref<56x160xf32, #tpu.memory_space<vmem>>, vector<25x28xf32>,
    %c0_6 = arith.constant 0 : index
    %c0_7 = arith.constant 0 : index
    %c0_8 = arith.constant 0 : index
    %c0_9 = arith.constant 0 : index
    %5 = vector.load %arg0[%c0_6, %c0_7, %c0_8, %c0_9] : memref<2x1x28x28xf32, #tpu.memory_space<vmem>>, vector<1x1x26x28xf32>
    %6 = vector.shape_cast %5 : vector<1x1x26x28xf32> to vector<26x28xf32>
    %c0_10 = arith.constant 0 : index
    %c32 = arith.constant 32 : index
    %7 = vector.load %arg12[%c0_10, %c32] : memref<56x160xf32, #tpu.memory_space<vmem>>, vector<26x28xf32>
    tpu.vector_store %arg12[%c0_10, %c32], %6 {strides = array<i32>} : memref<56x160xf32, #tpu.memory_space<vmem>>, vector<26x28xf32>,
    %c0_11 = arith.constant 0 : index
    %c0_12 = arith.constant 0 : index
    %c1_13 = arith.constant 1 : index
    %c0_14 = arith.constant 0 : index
    %8 = vector.load %arg0[%c0_11, %c0_12, %c1_13, %c0_14] : memref<2x1x28x28xf32, #tpu.memory_space<vmem>>, vector<1x1x26x28xf32>
    %9 = vector.shape_cast %8 : vector<1x1x26x28xf32> to vector<26x28xf32>
    %c0_15 = arith.constant 0 : index
    %c64 = arith.constant 64 : index
    %10 = vector.load %arg12[%c0_15, %c64] : memref<56x160xf32, #tpu.memory_space<vmem>>, vector<26x28xf32>
    tpu.vector_store %arg12[%c0_15, %c64], %9 {strides = array<i32>} : memref<56x160xf32, #tpu.memory_space<vmem>>, vector<26x28xf32>,
    %c0_16 = arith.constant 0 : index
    %c0_17 = arith.constant 0 : index
    %c2 = arith.constant 2 : index
    %c0_18 = arith.constant 0 : index
    %11 = vector.load %arg0[%c0_16, %c0_17, %c2, %c0_18] : memref<2x1x28x28xf32, #tpu.memory_space<vmem>>, vector<1x1x26x28xf32>
    %12 = vector.shape_cast %11 : vector<1x1x26x28xf32> to vector<26x28xf32>
    %c0_19 = arith.constant 0 : index
    %c96 = arith.constant 96 : index
    %13 = vector.load %arg12[%c0_19, %c96] : memref<56x160xf32, #tpu.memory_space<vmem>>, vector<26x28xf32>
    tpu.vector_store %arg12[%c0_19, %c96], %12 {strides = array<i32>} : memref<56x160xf32, #tpu.memory_space<vmem>>, vector<26x28xf32>,
    %c0_20 = arith.constant 0 : index
    %c0_21 = arith.constant 0 : index
    %c3 = arith.constant 3 : index
    %c0_22 = arith.constant 0 : index
    %14 = vector.load %arg0[%c0_20, %c0_21, %c3, %c0_22] : memref<2x1x28x28xf32, #tpu.memory_space<vmem>>, vector<1x1x25x28xf32>
    %15 = vector.shape_cast %14 : vector<1x1x25x28xf32> to vector<25x28xf32>
    %c0_23 = arith.constant 0 : index
    %c128 = arith.constant 128 : index
    %16 = vector.load %arg12[%c0_23, %c128] : memref<56x160xf32, #tpu.memory_space<vmem>>, vector<25x28xf32>
    tpu.vector_store %arg12[%c0_23, %c128], %15 {strides = array<i32>} : memref<56x160xf32, #tpu.memory_space<vmem>>, vector<25x28xf32>,
    %c1_24 = arith.constant 1 : index
    %c0_25 = arith.constant 0 : index
    %c0_26 = arith.constant 0 : index
    %c0_27 = arith.constant 0 : index
    %17 = vector.load %arg0[%c1_24, %c0_25, %c0_26, %c0_27] : memref<2x1x28x28xf32, #tpu.memory_space<vmem>>, vector<1x1x25x28xf32>
    %18 = vector.shape_cast %17 : vector<1x1x25x28xf32> to vector<25x28xf32>
    %c27 = arith.constant 27 : index
    %c0_28 = arith.constant 0 : index
    %19 = vector.load %arg12[%c27, %c0_28] : memref<56x160xf32, #tpu.memory_space<vmem>>, vector<25x28xf32>
    tpu.vector_store %arg12[%c27, %c0_28], %18 {strides = array<i32>} : memref<56x160xf32, #tpu.memory_space<vmem>>, vector<25x28xf32>,
    %c1_29 = arith.constant 1 : index
    %c0_30 = arith.constant 0 : index
    %c0_31 = arith.constant 0 : index
    %c0_32 = arith.constant 0 : index
    %20 = vector.load %arg0[%c1_29, %c0_30, %c0_31, %c0_32] : memref<2x1x28x28xf32, #tpu.memory_space<vmem>>, vector<1x1x26x28xf32>
    %21 = vector.shape_cast %20 : vector<1x1x26x28xf32> to vector<26x28xf32>
    %c26 = arith.constant 26 : index
    %c32_33 = arith.constant 32 : index
    %22 = vector.load %arg12[%c26, %c32_33] : memref<56x160xf32, #tpu.memory_space<vmem>>, vector<26x28xf32>
    tpu.vector_store %arg12[%c26, %c32_33], %21 {strides = array<i32>} : memref<56x160xf32, #tpu.memory_space<vmem>>, vector<26x28xf32>,
    %c1_34 = arith.constant 1 : index
    %c0_35 = arith.constant 0 : index
    %c1_36 = arith.constant 1 : index
    %c0_37 = arith.constant 0 : index
    %23 = vector.load %arg0[%c1_34, %c0_35, %c1_36, %c0_37] : memref<2x1x28x28xf32, #tpu.memory_space<vmem>>, vector<1x1x26x28xf32>
    %24 = vector.shape_cast %23 : vector<1x1x26x28xf32> to vector<26x28xf32>
    %c26_38 = arith.constant 26 : index
    %c64_39 = arith.constant 64 : index
    %25 = vector.load %arg12[%c26_38, %c64_39] : memref<56x160xf32, #tpu.memory_space<vmem>>, vector<26x28xf32>
    tpu.vector_store %arg12[%c26_38, %c64_39], %24 {strides = array<i32>} : memref<56x160xf32, #tpu.memory_space<vmem>>, vector<26x28xf32>,
    %c1_40 = arith.constant 1 : index
    %c0_41 = arith.constant 0 : index
    %c2_42 = arith.constant 2 : index
    %c0_43 = arith.constant 0 : index
    %26 = vector.load %arg0[%c1_40, %c0_41, %c2_42, %c0_43] : memref<2x1x28x28xf32, #tpu.memory_space<vmem>>, vector<1x1x26x28xf32>
    %27 = vector.shape_cast %26 : vector<1x1x26x28xf32> to vector<26x28xf32>
    %c26_44 = arith.constant 26 : index
    %c96_45 = arith.constant 96 : index
    %28 = vector.load %arg12[%c26_44, %c96_45] : memref<56x160xf32, #tpu.memory_space<vmem>>, vector<26x28xf32>
    tpu.vector_store %arg12[%c26_44, %c96_45], %27 {strides = array<i32>} : memref<56x160xf32, #tpu.memory_space<vmem>>, vector<26x28xf32>,
    %c1_46 = arith.constant 1 : index
    %c0_47 = arith.constant 0 : index
    %c3_48 = arith.constant 3 : index
    %c0_49 = arith.constant 0 : index
    %29 = vector.load %arg0[%c1_46, %c0_47, %c3_48, %c0_49] : memref<2x1x28x28xf32, #tpu.memory_space<vmem>>, vector<1x1x25x28xf32>
    %30 = vector.shape_cast %29 : vector<1x1x25x28xf32> to vector<25x28xf32>
    %c26_50 = arith.constant 26 : index
    %c128_51 = arith.constant 128 : index
    %31 = vector.load %arg12[%c26_50, %c128_51] : memref<56x160xf32, #tpu.memory_space<vmem>>, vector<25x28xf32>
    tpu.vector_store %arg12[%c26_50, %c128_51], %30 {strides = array<i32>} : memref<56x160xf32, #tpu.memory_space<vmem>>, vector<25x28xf32>,
    %c0_52 = arith.constant 0 : index
    %c0_53 = arith.constant 0 : index
    %32 = vector.load %arg12[%c0_52, %c0_53] : memref<56x160xf32, #tpu.memory_space<vmem>>, vector<56x160xf32>
    %c0_54 = arith.constant 0 : index
    %c0_55 = arith.constant 0 : index
    %33 = vector.load %arg1[%c0_54, %c0_55] : memref<160x156xf32, #tpu.memory_space<vmem>>, vector<160x156xf32>
    %cst_56 = arith.constant dense<0.000000e+00> : vector<56x156xf32>
    %34 = tpu.matmul %32, %33, %cst_56 {dimension_numbers = #tpu.dot_dimension_numbers<[1], [0], [0], [1], [0, 0, 1, 1], [], []>} : vector<56x160xf32>, vector<160x156xf32>, vector<56x156xf32> -> vector<56x156xf32>
    %c0_57 = arith.constant 0 : index
    %c0_58 = arith.constant 0 : index
    %35 = vector.load %arg2[%c0_57, %c0_58] : memref<1x156xf32, #tpu.memory_space<vmem>>, vector<1x156xf32>
    %36 = vector.broadcast %35 : vector<1x156xf32> to vector<56x156xf32>
    %37 = arith.addf %34, %36 : vector<56x156xf32>
    %c0_59 = arith.constant 0 : index
    %c0_60 = arith.constant 0 : index
    %c0_61 = arith.constant 0 : index
    %38 = vector.load %arg3[%c0_59, %c0_60, %c0_61] : memref<2x26x56xf32, #tpu.memory_space<vmem>>, vector<1x26x56xf32>
    %39 = vector.shape_cast %38 : vector<1x26x56xf32> to vector<26x56xf32>
    %cst_62 = arith.constant dense<0.000000e+00> : vector<26x156xf32>
    %40 = tpu.matmul %39, %37, %cst_62 {dimension_numbers = #tpu.dot_dimension_numbers<[1], [0], [0], [1], [0, 0, 1, 1], [], []>} : vector<26x56xf32>, vector<56x156xf32>, vector<26x156xf32> -> vector<26x156xf32>
    %c1_63 = arith.constant 1 : index
    %c0_64 = arith.constant 0 : index
    %c0_65 = arith.constant 0 : index
    %41 = vector.load %arg3[%c1_63, %c0_64, %c0_65] : memref<2x26x56xf32, #tpu.memory_space<vmem>>, vector<1x26x56xf32>
    %42 = vector.shape_cast %41 : vector<1x26x56xf32> to vector<26x56xf32>
    %cst_66 = arith.constant dense<0.000000e+00> : vector<26x156xf32>
    %43 = tpu.matmul %42, %37, %cst_66 {dimension_numbers = #tpu.dot_dimension_numbers<[1], [0], [0], [1], [0, 0, 1, 1], [], []>} : vector<26x56xf32>, vector<56x156xf32>, vector<26x156xf32> -> vector<26x156xf32>
    %44 = arith.maximumf %40, %43 : vector<26x156xf32>
    %c0_67 = arith.constant 0 : index
    %c0_68 = arith.constant 0 : index
    %c0_69 = arith.constant 0 : index
    %45 = vector.load %arg4[%c0_67, %c0_68, %c0_69] : memref<2x156x128xf32, #tpu.memory_space<vmem>>, vector<1x156x128xf32>
    %46 = vector.shape_cast %45 : vector<1x156x128xf32> to vector<156x128xf32>
    %cst_70 = arith.constant dense<0.000000e+00> : vector<26x128xf32>
    %47 = tpu.matmul %44, %46, %cst_70 {dimension_numbers = #tpu.dot_dimension_numbers<[1], [0], [0], [1], [0, 0, 1, 1], [], []>} : vector<26x156xf32>, vector<156x128xf32>, vector<26x128xf32> -> vector<26x128xf32>
    %c1_71 = arith.constant 1 : index
    %c0_72 = arith.constant 0 : index
    %c0_73 = arith.constant 0 : index
    %48 = vector.load %arg4[%c1_71, %c0_72, %c0_73] : memref<2x156x128xf32, #tpu.memory_space<vmem>>, vector<1x156x128xf32>
    %49 = vector.shape_cast %48 : vector<1x156x128xf32> to vector<156x128xf32>
    %cst_74 = arith.constant dense<0.000000e+00> : vector<26x128xf32>
    %50 = tpu.matmul %44, %49, %cst_74 {dimension_numbers = #tpu.dot_dimension_numbers<[1], [0], [0], [1], [0, 0, 1, 1], [], []>} : vector<26x156xf32>, vector<156x128xf32>, vector<26x128xf32> -> vector<26x128xf32>
    %51 = arith.maximumf %47, %50 : vector<26x128xf32>
    %c0_75 = arith.constant 0 : index
    %c0_76 = arith.constant 0 : index
    %52 = vector.load %arg13[%c0_75, %c0_76] : memref<32x128xf32, #tpu.memory_space<vmem>>, vector<26x128xf32>
    tpu.vector_store %arg13[%c0_75, %c0_76], %51 {strides = array<i32>} : memref<32x128xf32, #tpu.memory_space<vmem>>, vector<26x128xf32>,
    %cst_77 = arith.constant 0.000000e+00 : f32
    %53 = vector.broadcast %cst_77 : f32 to vector<24x640xf32>
    %c0_78 = arith.constant 0 : index
    %c0_79 = arith.constant 0 : index
    %54 = vector.load %arg14[%c0_78, %c0_79] : memref<24x640xf32, #tpu.memory_space<vmem>>, vector<24x640xf32>
    tpu.vector_store %arg14[%c0_78, %c0_79], %53 {strides = array<i32>} : memref<24x640xf32, #tpu.memory_space<vmem>>, vector<24x640xf32>,
    %c0_80 = arith.constant 0 : index
    %c0_81 = arith.constant 0 : index
    %55 = vector.load %arg13[%c0_80, %c0_81] : memref<32x128xf32, #tpu.memory_space<vmem>>, vector<9x128xf32>
    %c0_82 = arith.constant 0 : index
    %c0_83 = arith.constant 0 : index
    %56 = vector.load %arg14[%c0_82, %c0_83] : memref<24x640xf32, #tpu.memory_space<vmem>>, vector<9x128xf32>
    tpu.vector_store %arg14[%c0_82, %c0_83], %55 {strides = array<i32>} : memref<24x640xf32, #tpu.memory_space<vmem>>, vector<9x128xf32>,
    %c1_84 = arith.constant 1 : index
    %c0_85 = arith.constant 0 : index
    %57 = vector.load %arg13[%c1_84, %c0_85] : memref<32x128xf32, #tpu.memory_space<vmem>>, vector<9x128xf32>
    %c0_86 = arith.constant 0 : index
    %c128_87 = arith.constant 128 : index
    %58 = vector.load %arg14[%c0_86, %c128_87] : memref<24x640xf32, #tpu.memory_space<vmem>>, vector<9x128xf32>
    tpu.vector_store %arg14[%c0_86, %c128_87], %57 {strides = array<i32>} : memref<24x640xf32, #tpu.memory_space<vmem>>, vector<9x128xf32>,
    %c2_88 = arith.constant 2 : index
    %c0_89 = arith.constant 0 : index
    %59 = vector.load %arg13[%c2_88, %c0_89] : memref<32x128xf32, #tpu.memory_space<vmem>>, vector<9x128xf32>
    %c0_90 = arith.constant 0 : index
    %c256 = arith.constant 256 : index
    %60 = vector.load %arg14[%c0_90, %c256] : memref<24x640xf32, #tpu.memory_space<vmem>>, vector<9x128xf32>
    tpu.vector_store %arg14[%c0_90, %c256], %59 {strides = array<i32>} : memref<24x640xf32, #tpu.memory_space<vmem>>, vector<9x128xf32>,
    %c3_91 = arith.constant 3 : index
    %c0_92 = arith.constant 0 : index
    %61 = vector.load %arg13[%c3_91, %c0_92] : memref<32x128xf32, #tpu.memory_space<vmem>>, vector<9x128xf32>
    %c0_93 = arith.constant 0 : index
    %c384 = arith.constant 384 : index
    %62 = vector.load %arg14[%c0_93, %c384] : memref<24x640xf32, #tpu.memory_space<vmem>>, vector<9x128xf32>
    tpu.vector_store %arg14[%c0_93, %c384], %61 {strides = array<i32>} : memref<24x640xf32, #tpu.memory_space<vmem>>, vector<9x128xf32>,
    %c4 = arith.constant 4 : index
    %c0_94 = arith.constant 0 : index
    %63 = vector.load %arg13[%c4, %c0_94] : memref<32x128xf32, #tpu.memory_space<vmem>>, vector<9x128xf32>
    %c0_95 = arith.constant 0 : index
    %c512 = arith.constant 512 : index
    %64 = vector.load %arg14[%c0_95, %c512] : memref<24x640xf32, #tpu.memory_space<vmem>>, vector<9x128xf32>
    tpu.vector_store %arg14[%c0_95, %c512], %63 {strides = array<i32>} : memref<24x640xf32, #tpu.memory_space<vmem>>, vector<9x128xf32>,
    %c13 = arith.constant 13 : index
    %c0_96 = arith.constant 0 : index
    %65 = vector.load %arg13[%c13, %c0_96] : memref<32x128xf32, #tpu.memory_space<vmem>>, vector<9x128xf32>
    %c9 = arith.constant 9 : index
    %c0_97 = arith.constant 0 : index
    %66 = vector.load %arg14[%c9, %c0_97] : memref<24x640xf32, #tpu.memory_space<vmem>>, vector<9x128xf32>
    tpu.vector_store %arg14[%c9, %c0_97], %65 {strides = array<i32>} : memref<24x640xf32, #tpu.memory_space<vmem>>, vector<9x128xf32>,
    %c14 = arith.constant 14 : index
    %c0_98 = arith.constant 0 : index
    %67 = vector.load %arg13[%c14, %c0_98] : memref<32x128xf32, #tpu.memory_space<vmem>>, vector<9x128xf32>
    %c9_99 = arith.constant 9 : index
    %c128_100 = arith.constant 128 : index
    %68 = vector.load %arg14[%c9_99, %c128_100] : memref<24x640xf32, #tpu.memory_space<vmem>>, vector<9x128xf32>
    tpu.vector_store %arg14[%c9_99, %c128_100], %67 {strides = array<i32>} : memref<24x640xf32, #tpu.memory_space<vmem>>, vector<9x128xf32>,
    %c15 = arith.constant 15 : index
    %c0_101 = arith.constant 0 : index
    %69 = vector.load %arg13[%c15, %c0_101] : memref<32x128xf32, #tpu.memory_space<vmem>>, vector<9x128xf32>
    %c9_102 = arith.constant 9 : index
    %c256_103 = arith.constant 256 : index
    %70 = vector.load %arg14[%c9_102, %c256_103] : memref<24x640xf32, #tpu.memory_space<vmem>>, vector<9x128xf32>
    tpu.vector_store %arg14[%c9_102, %c256_103], %69 {strides = array<i32>} : memref<24x640xf32, #tpu.memory_space<vmem>>, vector<9x128xf32>,
    %c16 = arith.constant 16 : index
    %c0_104 = arith.constant 0 : index
    %71 = vector.load %arg13[%c16, %c0_104] : memref<32x128xf32, #tpu.memory_space<vmem>>, vector<9x128xf32>
    %c9_105 = arith.constant 9 : index
    %c384_106 = arith.constant 384 : index
    %72 = vector.load %arg14[%c9_105, %c384_106] : memref<24x640xf32, #tpu.memory_space<vmem>>, vector<9x128xf32>
    tpu.vector_store %arg14[%c9_105, %c384_106], %71 {strides = array<i32>} : memref<24x640xf32, #tpu.memory_space<vmem>>, vector<9x128xf32>,
    %c17 = arith.constant 17 : index
    %c0_107 = arith.constant 0 : index
    %73 = vector.load %arg13[%c17, %c0_107] : memref<32x128xf32, #tpu.memory_space<vmem>>, vector<9x128xf32>
    %c9_108 = arith.constant 9 : index
    %c512_109 = arith.constant 512 : index
    %74 = vector.load %arg14[%c9_108, %c512_109] : memref<24x640xf32, #tpu.memory_space<vmem>>, vector<9x128xf32>
    tpu.vector_store %arg14[%c9_108, %c512_109], %73 {strides = array<i32>} : memref<24x640xf32, #tpu.memory_space<vmem>>, vector<9x128xf32>,
    %c0_110 = arith.constant 0 : index
    %c0_111 = arith.constant 0 : index
    %75 = vector.load %arg14[%c0_110, %c0_111] : memref<24x640xf32, #tpu.memory_space<vmem>>, vector<24x640xf32>
    %c0_112 = arith.constant 0 : index
    %c0_113 = arith.constant 0 : index
    %76 = vector.load %arg5[%c0_112, %c0_113] : memref<640x144xf32, #tpu.memory_space<vmem>>, vector<640x144xf32>
    %cst_114 = arith.constant dense<0.000000e+00> : vector<24x144xf32>
    %77 = tpu.matmul %75, %76, %cst_114 {dimension_numbers = #tpu.dot_dimension_numbers<[1], [0], [0], [1], [0, 0, 1, 1], [], []>} : vector<24x640xf32>, vector<640x144xf32>, vector<24x144xf32> -> vector<24x144xf32>
    %c0_115 = arith.constant 0 : index
    %c0_116 = arith.constant 0 : index
    %78 = vector.load %arg6[%c0_115, %c0_116] : memref<1x144xf32, #tpu.memory_space<vmem>>, vector<1x144xf32>
    %79 = vector.broadcast %78 : vector<1x144xf32> to vector<24x144xf32>
    %80 = arith.addf %77, %79 : vector<24x144xf32>
    %c0_117 = arith.constant 0 : index
    %c0_118 = arith.constant 0 : index
    %c0_119 = arith.constant 0 : index
    %81 = vector.load %arg7[%c0_117, %c0_118, %c0_119] : memref<2x8x24xf32, #tpu.memory_space<vmem>>, vector<1x8x24xf32>
    %82 = vector.shape_cast %81 : vector<1x8x24xf32> to vector<8x24xf32>
    %cst_120 = arith.constant dense<0.000000e+00> : vector<8x144xf32>
    %83 = tpu.matmul %82, %80, %cst_120 {dimension_numbers = #tpu.dot_dimension_numbers<[1], [0], [0], [1], [0, 0, 1, 1], [], []>} : vector<8x24xf32>, vector<24x144xf32>, vector<8x144xf32> -> vector<8x144xf32>
    %c1_121 = arith.constant 1 : index
    %c0_122 = arith.constant 0 : index
    %c0_123 = arith.constant 0 : index
    %84 = vector.load %arg7[%c1_121, %c0_122, %c0_123] : memref<2x8x24xf32, #tpu.memory_space<vmem>>, vector<1x8x24xf32>
    %85 = vector.shape_cast %84 : vector<1x8x24xf32> to vector<8x24xf32>
    %cst_124 = arith.constant dense<0.000000e+00> : vector<8x144xf32>
    %86 = tpu.matmul %85, %80, %cst_124 {dimension_numbers = #tpu.dot_dimension_numbers<[1], [0], [0], [1], [0, 0, 1, 1], [], []>} : vector<8x24xf32>, vector<24x144xf32>, vector<8x144xf32> -> vector<8x144xf32>
    %87 = arith.maximumf %83, %86 : vector<8x144xf32>
    %c0_125 = arith.constant 0 : index
    %c0_126 = arith.constant 0 : index
    %c0_127 = arith.constant 0 : index
    %88 = vector.load %arg8[%c0_125, %c0_126, %c0_127] : memref<2x144x64xf32, #tpu.memory_space<vmem>>, vector<1x144x64xf32>
    %89 = vector.shape_cast %88 : vector<1x144x64xf32> to vector<144x64xf32>
    %cst_128 = arith.constant dense<0.000000e+00> : vector<8x64xf32>
    %90 = tpu.matmul %87, %89, %cst_128 {dimension_numbers = #tpu.dot_dimension_numbers<[1], [0], [0], [1], [0, 0, 1, 1], [], []>} : vector<8x144xf32>, vector<144x64xf32>, vector<8x64xf32> -> vector<8x64xf32>
    %c1_129 = arith.constant 1 : index
    %c0_130 = arith.constant 0 : index
    %c0_131 = arith.constant 0 : index
    %91 = vector.load %arg8[%c1_129, %c0_130, %c0_131] : memref<2x144x64xf32, #tpu.memory_space<vmem>>, vector<1x144x64xf32>
    %92 = vector.shape_cast %91 : vector<1x144x64xf32> to vector<144x64xf32>
    %cst_132 = arith.constant dense<0.000000e+00> : vector<8x64xf32>
    %93 = tpu.matmul %87, %92, %cst_132 {dimension_numbers = #tpu.dot_dimension_numbers<[1], [0], [0], [1], [0, 0, 1, 1], [], []>} : vector<8x144xf32>, vector<144x64xf32>, vector<8x64xf32> -> vector<8x64xf32>
    %94 = arith.maximumf %90, %93 : vector<8x64xf32>
    %cst_133 = arith.constant 0.000000e+00 : f32
    %95 = vector.broadcast %cst_133 : f32 to vector<8x256xf32>
    %c0_134 = arith.constant 0 : index
    %c0_135 = arith.constant 0 : index
    %96 = vector.load %arg15[%c0_134, %c0_135] : memref<8x256xf32, #tpu.memory_space<vmem>>, vector<8x256xf32>
    tpu.vector_store %arg15[%c0_134, %c0_135], %95 {strides = array<i32>} : memref<8x256xf32, #tpu.memory_space<vmem>>, vector<8x256xf32>,
    %97 = vector.extract_strided_slice %94 {offsets = [0, 0], sizes = [1, 64], strides = [1, 1]} : vector<8x64xf32> to vector<1x64xf32>
    %c0_136 = arith.constant 0 : index
    %c0_137 = arith.constant 0 : index
    %98 = vector.load %arg15[%c0_136, %c0_137] : memref<8x256xf32, #tpu.memory_space<vmem>>, vector<1x64xf32>
    tpu.vector_store %arg15[%c0_136, %c0_137], %97 {strides = array<i32>} : memref<8x256xf32, #tpu.memory_space<vmem>>, vector<1x64xf32>,
    %99 = vector.extract_strided_slice %94 {offsets = [1, 0], sizes = [1, 64], strides = [1, 1]} : vector<8x64xf32> to vector<1x64xf32>
    %c0_138 = arith.constant 0 : index
    %c64_139 = arith.constant 64 : index
    %100 = vector.load %arg15[%c0_138, %c64_139] : memref<8x256xf32, #tpu.memory_space<vmem>>, vector<1x64xf32>
    tpu.vector_store %arg15[%c0_138, %c64_139], %99 {strides = array<i32>} : memref<8x256xf32, #tpu.memory_space<vmem>>, vector<1x64xf32>,
    %101 = vector.extract_strided_slice %94 {offsets = [2, 0], sizes = [1, 64], strides = [1, 1]} : vector<8x64xf32> to vector<1x64xf32>
    %c0_140 = arith.constant 0 : index
    %c128_141 = arith.constant 128 : index
    %102 = vector.load %arg15[%c0_140, %c128_141] : memref<8x256xf32, #tpu.memory_space<vmem>>, vector<1x64xf32>
    tpu.vector_store %arg15[%c0_140, %c128_141], %101 {strides = array<i32>} : memref<8x256xf32, #tpu.memory_space<vmem>>, vector<1x64xf32>,
    %103 = vector.extract_strided_slice %94 {offsets = [3, 0], sizes = [1, 64], strides = [1, 1]} : vector<8x64xf32> to vector<1x64xf32>
    %c0_142 = arith.constant 0 : index
    %c192 = arith.constant 192 : index
    %104 = vector.load %arg15[%c0_142, %c192] : memref<8x256xf32, #tpu.memory_space<vmem>>, vector<1x64xf32>
    tpu.vector_store %arg15[%c0_142, %c192], %103 {strides = array<i32>} : memref<8x256xf32, #tpu.memory_space<vmem>>, vector<1x64xf32>,
    %105 = vector.extract_strided_slice %94 {offsets = [4, 0], sizes = [1, 64], strides = [1, 1]} : vector<8x64xf32> to vector<1x64xf32>
    %c1_143 = arith.constant 1 : index
    %c0_144 = arith.constant 0 : index
    %106 = vector.load %arg15[%c1_143, %c0_144] : memref<8x256xf32, #tpu.memory_space<vmem>>, vector<1x64xf32>
    tpu.vector_store %arg15[%c1_143, %c0_144], %105 {strides = array<i32>} : memref<8x256xf32, #tpu.memory_space<vmem>>, vector<1x64xf32>,
    %107 = vector.extract_strided_slice %94 {offsets = [5, 0], sizes = [1, 64], strides = [1, 1]} : vector<8x64xf32> to vector<1x64xf32>
    %c1_145 = arith.constant 1 : index
    %c64_146 = arith.constant 64 : index
    %108 = vector.load %arg15[%c1_145, %c64_146] : memref<8x256xf32, #tpu.memory_space<vmem>>, vector<1x64xf32>
    tpu.vector_store %arg15[%c1_145, %c64_146], %107 {strides = array<i32>} : memref<8x256xf32, #tpu.memory_space<vmem>>, vector<1x64xf32>,
    %109 = vector.extract_strided_slice %94 {offsets = [6, 0], sizes = [1, 64], strides = [1, 1]} : vector<8x64xf32> to vector<1x64xf32>
    %c1_147 = arith.constant 1 : index
    %c128_148 = arith.constant 128 : index
    %110 = vector.load %arg15[%c1_147, %c128_148] : memref<8x256xf32, #tpu.memory_space<vmem>>, vector<1x64xf32>
    tpu.vector_store %arg15[%c1_147, %c128_148], %109 {strides = array<i32>} : memref<8x256xf32, #tpu.memory_space<vmem>>, vector<1x64xf32>,
    %111 = vector.extract_strided_slice %94 {offsets = [7, 0], sizes = [1, 64], strides = [1, 1]} : vector<8x64xf32> to vector<1x64xf32>
    %c1_149 = arith.constant 1 : index
    %c192_150 = arith.constant 192 : index
    %112 = vector.load %arg15[%c1_149, %c192_150] : memref<8x256xf32, #tpu.memory_space<vmem>>, vector<1x64xf32>
    tpu.vector_store %arg15[%c1_149, %c192_150], %111 {strides = array<i32>} : memref<8x256xf32, #tpu.memory_space<vmem>>, vector<1x64xf32>,
    %c0_151 = arith.constant 0 : index
    %c0_152 = arith.constant 0 : index
    %113 = vector.load %arg15[%c0_151, %c0_152] : memref<8x256xf32, #tpu.memory_space<vmem>>, vector<8x256xf32>
    %c0_153 = arith.constant 0 : index
    %c0_154 = arith.constant 0 : index
    %114 = vector.load %arg9[%c0_153, %c0_154] : memref<256x10xf32, #tpu.memory_space<vmem>>, vector<256x10xf32>
    %cst_155 = arith.constant dense<0.000000e+00> : vector<8x10xf32>
    %115 = tpu.matmul %113, %114, %cst_155 {dimension_numbers = #tpu.dot_dimension_numbers<[1], [0], [0], [1], [0, 0, 1, 1], [], []>} : vector<8x256xf32>, vector<256x10xf32>, vector<8x10xf32> -> vector<8x10xf32>
    %c0_156 = arith.constant 0 : index
    %c0_157 = arith.constant 0 : index
    %116 = vector.load %arg10[%c0_156, %c0_157] : memref<1x10xf32, #tpu.memory_space<vmem>>, vector<1x10xf32>
    %117 = vector.broadcast %116 : vector<1x10xf32> to vector<8x10xf32>
    %118 = arith.addf %115, %117 : vector<8x10xf32>
    %119 = vector.extract_strided_slice %118 {offsets = [0, 0], sizes = [2, 10], strides = [1, 1]} : vector<8x10xf32> to vector<2x10xf32>
    %c0_158 = arith.constant 0 : index
    %c0_159 = arith.constant 0 : index
    %120 = vector.load %arg11[%c0_158, %c0_159] : memref<2x10xf32, #tpu.memory_space<vmem>>, vector<2x10xf32>
    tpu.vector_store %arg11[%c0_158, %c0_159], %119 {strides = array<i32>} : memref<2x10xf32, #tpu.memory_space<vmem>>, vector<2x10xf32>,
    return
  }
}

</mosaic_0001>

<llo_original>
// kernel: lenet5_forward.1
$region0: #{lenet5_forward.1}
  #allocation0 [shape = 'u32[]', space=smem, size = 0x4, offset = 0x4, fixed_abs, tag = 'smem constant byte address 0x4 - core index']
  #allocation1 [shape = 'u32[144,128]{1,0:T(1,128)}', space=vmem, size = 0x12000, scoped, tag = 'internal scratch']
  #allocation2 [shape = 'f32[56,160]{1,0:T(8,128)}', space=vmem, size = 0xe000, scoped, tag = 'scratch operand']
  #allocation3 [shape = 'f32[32,128]{1,0:T(8,128)}', space=vmem, size = 0x4000, scoped, tag = 'scratch operand']
  #allocation4 [shape = 'f32[24,640]{1,0:T(8,128)}', space=vmem, size = 0xf000, scoped, tag = 'scratch operand']
  #allocation5 [shape = 'f32[8,256]{1,0:T(8,128)}', space=vmem, size = 0x2000, scoped, tag = 'scratch operand']
  %s0 = inlined_call_operand.vmem [shape: f32[2,1,28,28], index: 0, kind: input, shape index: {}]
  %s1 = inlined_call_operand.vmem [shape: f32[160,156], index: 1, kind: input, shape index: {}]
  %s2 = inlined_call_operand.vmem [shape: f32[1,156], index: 2, kind: input, shape index: {}]
  %s3 = inlined_call_operand.vmem [shape: f32[2,26,56], index: 3, kind: input, shape index: {}]
  %s4 = inlined_call_operand.vmem [shape: f32[2,156,128], index: 4, kind: input, shape index: {}]
  %s5 = inlined_call_operand.vmem [shape: f32[640,144], index: 5, kind: input, shape index: {}]
  %s6 = inlined_call_operand.vmem [shape: f32[1,144], index: 6, kind: input, shape index: {}]
  %s7 = inlined_call_operand.vmem [shape: f32[2,8,24], index: 7, kind: input, shape index: {}]
  %s8 = inlined_call_operand.vmem [shape: f32[2,144,64], index: 8, kind: input, shape index: {}]
  %s9 = inlined_call_operand.vmem [shape: f32[256,10], index: 9, kind: input, shape index: {}]
  %s10 = inlined_call_operand.vmem [shape: f32[1,10], index: 10, kind: input, shape index: {}]
  %s11 = inlined_call_operand.hbm [shape: f32[2,10], index: 11, kind: output, shape index: {}]
  %s12 = sld [smem:[#allocation0]]
  $region54: #{lenet5_forward.1} parent=0
    _
  %s14 = ssub.s32 1, %s12
  %s15 = scalar_select 0, %s14, %s12
  $region1: #{lenet5_forward.1} parent=0
    #allocation6 [shape = 'u8[1024]{0}', space=vmem, size = 0x400, scoped, tag = 'output window, operand 0, single buffered']
    #allocation7 [shape = 's32[1]{0}', space=sflag, size = 0x4, scoped, tag = 'scoped memory for lenet5_forward.1']
    %16 = vsyncpa [#allocation7], 0
    // Predicated region
    $region2: #{lenet5_forward.1} parent=1 // pred_check
      _
    $region3: #{lenet5_forward.1} parent=1 // pred_check_branch
      %18 = sbr.rel (0) target = $region5
    $region4: #{lenet5_forward.1} parent=1 // pred_region
      _
    $region5: #{lenet5_forward.1} parent=1 // pred_fallthru
      _
    // Predicated region
    $region6: #{lenet5_forward.1} parent=1 // pred_check
      _
    $region7: #{lenet5_forward.1} parent=1 // pred_check_branch
      %20 = sbr.rel (0) target = $region9
    $region8: #{lenet5_forward.1} parent=1 // pred_region
      _
    $region9: #{lenet5_forward.1} parent=1 // pred_fallthru
      _
    // Predicated region
    $region10: #{lenet5_forward.1} parent=1 // pred_check
      _
    $region11: #{lenet5_forward.1} parent=1 // pred_check_branch
      %22 = sbr.rel (0) target = $region13
    $region12: #{lenet5_forward.1} parent=1 // pred_region
      _
    $region13: #{lenet5_forward.1} parent=1 // pred_fallthru
      _
    // Predicated region
    $region14: #{lenet5_forward.1} parent=1 // pred_check
      _
    $region15: #{lenet5_forward.1} parent=1 // pred_check_branch
      %24 = sbr.rel (0) target = $region17
    $region16: #{lenet5_forward.1} parent=1 // pred_region
      _
    $region17: #{lenet5_forward.1} parent=1 // pred_fallthru
      _
    // Predicated region
    $region18: #{lenet5_forward.1} parent=1 // pred_check
      _
    $region19: #{lenet5_forward.1} parent=1 // pred_check_branch
      %26 = sbr.rel (0) target = $region21
    $region20: #{lenet5_forward.1} parent=1 // pred_region
      _
    $region21: #{lenet5_forward.1} parent=1 // pred_fallthru
      _
    // Predicated region
    $region22: #{lenet5_forward.1} parent=1 // pred_check
      _
    $region23: #{lenet5_forward.1} parent=1 // pred_check_branch
      %28 = sbr.rel (0) target = $region25
    $region24: #{lenet5_forward.1} parent=1 // pred_region
      _
    $region25: #{lenet5_forward.1} parent=1 // pred_fallthru
      _
    // Predicated region
    $region26: #{lenet5_forward.1} parent=1 // pred_check
      _
    $region27: #{lenet5_forward.1} parent=1 // pred_check_branch
      %30 = sbr.rel (0) target = $region29
    $region28: #{lenet5_forward.1} parent=1 // pred_region
      _
    $region29: #{lenet5_forward.1} parent=1 // pred_fallthru
      _
    // Predicated region
    $region30: #{lenet5_forward.1} parent=1 // pred_check
      _
    $region31: #{lenet5_forward.1} parent=1 // pred_check_branch
      %32 = sbr.rel (0) target = $region33
    $region32: #{lenet5_forward.1} parent=1 // pred_region
      _
    $region33: #{lenet5_forward.1} parent=1 // pred_fallthru
      _
    // Predicated region
    $region34: #{lenet5_forward.1} parent=1 // pred_check
      _
    $region35: #{lenet5_forward.1} parent=1 // pred_check_branch
      %34 = sbr.rel (0) target = $region37
    $region36: #{lenet5_forward.1} parent=1 // pred_region
      _
    $region37: #{lenet5_forward.1} parent=1 // pred_fallthru
      _
    // Predicated region
    $region38: #{lenet5_forward.1} parent=1 // pred_check
      _
    $region39: #{lenet5_forward.1} parent=1 // pred_check_branch
      %36 = sbr.rel (0) target = $region41
    $region40: #{lenet5_forward.1} parent=1 // pred_region
      _
    $region41: #{lenet5_forward.1} parent=1 // pred_fallthru
      _
    // Predicated region
    $region42: #{lenet5_forward.1} parent=1 // pred_check
      _
    $region43: #{lenet5_forward.1} parent=1 // pred_check_branch
      %38 = sbr.rel (0) target = $region45
    $region44: #{lenet5_forward.1} parent=1 // pred_region
      _
    $region45: #{lenet5_forward.1} parent=1 // pred_fallthru
      _
    %39 = vst [vmem:[#allocation2] sm:$0xff] 0.0
    %vm40 = vcmask 261120
    %41 = vst.msk [vmem:[#allocation2 + $0x8] sm:$0xff] %vm40, 0.0
    %42 = vst [vmem:[#allocation2 + $0x10] sm:$0xff] 0.0
    %43 = vst.msk [vmem:[#allocation2 + $0x18] sm:$0xff] %vm40, 0.0
    %44 = vst [vmem:[#allocation2 + $0x20] sm:$0xff] 0.0
    %45 = vst.msk [vmem:[#allocation2 + $0x28] sm:$0xff] %vm40, 0.0
    %46 = vst [vmem:[#allocation2 + $0x30] sm:$0xff] 0.0
    %47 = vst.msk [vmem:[#allocation2 + $0x38] sm:$0xff] %vm40, 0.0
    %48 = vst [vmem:[#allocation2 + $0x40] sm:$0xff] 0.0
    %49 = vst.msk [vmem:[#allocation2 + $0x48] sm:$0xff] %vm40, 0.0
    %50 = vst [vmem:[#allocation2 + $0x50] sm:$0xff] 0.0
    %51 = vst.msk [vmem:[#allocation2 + $0x58] sm:$0xff] %vm40, 0.0
    %52 = vst [vmem:[#allocation2 + $0x60] sm:$0xff] 0.0
    %53 = vst.msk [vmem:[#allocation2 + $0x68] sm:$0xff] %vm40, 0.0
    %v54 = vld [vmem:[%s0] sm:$0xff]
    %v55 = vld [vmem:[%s0 + $0x8] sm:$0xff]
    %v56 = vld [vmem:[%s0 + $0x10] sm:$0xff]
    %v57 = vld [vmem:[%s0 + $0x18] sm:$0x1]
    %vm62 = vcmask 1040384
    %v63 = vrot.slane %v54, 7
    %v64 = vrot.slane %v55, 7
    %v65 = vsel %vm62, %v63, %v64
    %v66 = vrot.slane %v56, 7
    %v67 = vsel %vm62, %v64, %v66
    %v68 = vrot.slane %v57, 7
    %v69 = vsel %vm62, %v66, %v68
    %vm74 = vcmask 228353
    %75 = vst.msk [vmem:[#allocation2] sm:$0xfe] %vm74, %v63
    %vm76 = vcmask 228352
    %77 = vst.msk [vmem:[#allocation2 + $0x10] sm:$0xff] %vm76, %v65
    %78 = vst.msk [vmem:[#allocation2 + $0x20] sm:$0xff] %vm76, %v67
    %vm79 = vcmask 222208
    %80 = vst.msk [vmem:[#allocation2 + $0x30] sm:$0x3] %vm79, %v69
    %v81 = vld [vmem:[%s0] sm:$0xff]
    %v82 = vld [vmem:[%s0 + $0x8] sm:$0xff]
    %v83 = vld [vmem:[%s0 + $0x10] sm:$0xff]
    %v84 = vld [vmem:[%s0 + $0x18] sm:$0x3]
    %89 = vrot.lane.b32.xlu0 %v81, 32
    %v90 = vpop.permute.xlu0 %89
    %91 = vrot.lane.b32.xlu0 %v82, 32
    %v92 = vpop.permute.xlu0 %91
    %93 = vrot.lane.b32.xlu0 %v83, 32
    %v94 = vpop.permute.xlu0 %93
    %95 = vrot.lane.b32.xlu0 %v84, 32
    %v96 = vpop.permute.xlu0 %95
    %vm101 = vcmask 490752
    %102 = vst.msk [vmem:[#allocation2] sm:$0xff] %vm101, %v90
    %103 = vst.msk [vmem:[#allocation2 + $0x10] sm:$0xff] %vm101, %v92
    %104 = vst.msk [vmem:[#allocation2 + $0x20] sm:$0xff] %vm101, %v94
    %vm105 = vcmask 484608
    %106 = vst.msk [vmem:[#allocation2 + $0x30] sm:$0x3] %vm105, %v96
    %v107 = vld [vmem:[%s0 + $0x1] sm:$0xff]
    %v108 = vld [vmem:[%s0 + $0x9] sm:$0xff]
    %v109 = vld [vmem:[%s0 + $0x11] sm:$0xff]
    %v110 = vld [vmem:[%s0 + $0x19] sm:$0x3]
    %115 = vrot.lane.b32.xlu0 %v107, 64
    %v116 = vpop.permute.xlu0 %115
    %117 = vrot.lane.b32.xlu0 %v108, 64
    %v118 = vpop.permute.xlu0 %117
    %119 = vrot.lane.b32.xlu0 %v109, 64
    %v120 = vpop.permute.xlu0 %119
    %121 = vrot.lane.b32.xlu0 %v110, 64
    %v122 = vpop.permute.xlu0 %121
    %vm127 = vcmask 753152
    %128 = vst.msk [vmem:[#allocation2] sm:$0xff] %vm127, %v116
    %129 = vst.msk [vmem:[#allocation2 + $0x10] sm:$0xff] %vm127, %v118
    %130 = vst.msk [vmem:[#allocation2 + $0x20] sm:$0xff] %vm127, %v120
    %vm131 = vcmask 747008
    %132 = vst.msk [vmem:[#allocation2 + $0x30] sm:$0x3] %vm131, %v122
    %v133 = vld [vmem:[%s0 + $0x2] sm:$0xff]
    %v134 = vld [vmem:[%s0 + $0xa] sm:$0xff]
    %v135 = vld [vmem:[%s0 + $0x12] sm:$0xff]
    %v136 = vld [vmem:[%s0 + $0x1a] sm:$0x3]
    %141 = vrot.lane.b32.xlu0 %v133, 96
    %v142 = vpop.permute.xlu0 %141
    %143 = vrot.lane.b32.xlu0 %v134, 96
    %v144 = vpop.permute.xlu0 %143
    %145 = vrot.lane.b32.xlu0 %v135, 96
    %v146 = vpop.permute.xlu0 %145
    %147 = vrot.lane.b32.xlu0 %v136, 96
    %v148 = vpop.permute.xlu0 %147
    %vm153 = vcmask 1015552
    %154 = vst.msk [vmem:[#allocation2] sm:$0xff] %vm153, %v142
    %155 = vst.msk [vmem:[#allocation2 + $0x10] sm:$0xff] %vm153, %v144
    %156 = vst.msk [vmem:[#allocation2 + $0x20] sm:$0xff] %vm153, %v146
    %vm157 = vcmask 1009408
    %158 = vst.msk [vmem:[#allocation2 + $0x30] sm:$0x3] %vm157, %v148
    %v159 = vld [vmem:[%s0 + $0x3] sm:$0xff]
    %v160 = vld [vmem:[%s0 + $0xb] sm:$0xff]
    %v161 = vld [vmem:[%s0 + $0x13] sm:$0xff]
    %v162 = vld [vmem:[%s0 + $0x1b] sm:$0x1]
    %163 = vst.msk [vmem:[#allocation2 + $0x8] sm:$0xff] %vm76, %v159
    %164 = vst.msk [vmem:[#allocation2 + $0x18] sm:$0xff] %vm76, %v160
    %165 = vst.msk [vmem:[#allocation2 + $0x28] sm:$0xff] %vm76, %v161
    %vm166 = vcmask 221184
    %167 = vst.msk [vmem:[#allocation2 + $0x38] sm:$0x1] %vm166, %v162
    %s168 = scalar_lea.vmem %s0, 32
    %v169 = vld [vmem:[%s168] sm:$0xff]
    %v170 = vld [vmem:[%s168 + $0x8] sm:$0xff]
    %v171 = vld [vmem:[%s168 + $0x10] sm:$0xff]
    %v172 = vld [vmem:[%s168 + $0x18] sm:$0x1]
    %vm177 = vcmask 1042432
    %v178 = vrot.slane %v169, 5
    %v179 = vrot.slane %v170, 5
    %v180 = vsel %vm177, %v178, %v179
    %v181 = vrot.slane %v171, 5
    %v182 = vsel %vm177, %v179, %v181
    %v183 = vrot.slane %v172, 5
    %v184 = vsel %vm177, %v181, %v183
    %vm189 = vcmask 228355
    %190 = vst.msk [vmem:[#allocation2 + $0x30] sm:$0xf8] %vm189, %v178
    %191 = vst.msk [vmem:[#allocation2 + $0x40] sm:$0xff] %vm76, %v180
    %192 = vst.msk [vmem:[#allocation2 + $0x50] sm:$0xff] %vm76, %v182
    %vm193 = vcmask 224256
    %194 = vst.msk [vmem:[#allocation2 + $0x60] sm:$0xf] %vm193, %v184
    %v195 = vld [vmem:[%s168] sm:$0xff]
    %v196 = vld [vmem:[%s168 + $0x8] sm:$0xff]
    %v197 = vld [vmem:[%s168 + $0x10] sm:$0xff]
    %v198 = vld [vmem:[%s168 + $0x18] sm:$0x3]
    %vm203 = vcmask 1041408
    %v204 = vrot.slane %v195, 6
    %v205 = vrot.slane %v196, 6
    %v206 = vsel %vm203, %v204, %v205
    %v207 = vrot.slane %v197, 6
    %v208 = vsel %vm203, %v205, %v207
    %v209 = vrot.slane %v198, 6
    %v210 = vsel %vm203, %v207, %v209
    %211 = vrot.lane.b32.xlu0 %v204, 32
    %v212 = vpop.permute.xlu0 %211
    %213 = vrot.lane.b32.xlu0 %v206, 32
    %v214 = vpop.permute.xlu0 %213
    %215 = vrot.lane.b32.xlu0 %v208, 32
    %v216 = vpop.permute.xlu0 %215
    %217 = vrot.lane.b32.xlu0 %v210, 32
    %v218 = vpop.permute.xlu0 %217
    %vm223 = vcmask 490754
    %224 = vst.msk [vmem:[#allocation2 + $0x30] sm:$0xfc] %vm223, %v212
    %225 = vst.msk [vmem:[#allocation2 + $0x40] sm:$0xff] %vm101, %v214
    %226 = vst.msk [vmem:[#allocation2 + $0x50] sm:$0xff] %vm101, %v216
    %vm227 = vcmask 486656
    %228 = vst.msk [vmem:[#allocation2 + $0x60] sm:$0xf] %vm227, %v218
    %v229 = vld [vmem:[%s168 + $0x1] sm:$0xff]
    %v230 = vld [vmem:[%s168 + $0x9] sm:$0xff]
    %v231 = vld [vmem:[%s168 + $0x11] sm:$0xff]
    %v232 = vld [vmem:[%s168 + $0x19] sm:$0x3]
    %v237 = vrot.slane %v229, 6
    %v238 = vrot.slane %v230, 6
    %v239 = vsel %vm203, %v237, %v238
    %v240 = vrot.slane %v231, 6
    %v241 = vsel %vm203, %v238, %v240
    %v242 = vrot.slane %v232, 6
    %v243 = vsel %vm203, %v240, %v242
    %244 = vrot.lane.b32.xlu0 %v237, 64
    %v245 = vpop.permute.xlu0 %244
    %246 = vrot.lane.b32.xlu0 %v239, 64
    %v247 = vpop.permute.xlu0 %246
    %248 = vrot.lane.b32.xlu0 %v241, 64
    %v249 = vpop.permute.xlu0 %248
    %250 = vrot.lane.b32.xlu0 %v243, 64
    %v251 = vpop.permute.xlu0 %250
    %vm256 = vcmask 753154
    %257 = vst.msk [vmem:[#allocation2 + $0x30] sm:$0xfc] %vm256, %v245
    %258 = vst.msk [vmem:[#allocation2 + $0x40] sm:$0xff] %vm127, %v247
    %259 = vst.msk [vmem:[#allocation2 + $0x50] sm:$0xff] %vm127, %v249
    %vm260 = vcmask 749056
    %261 = vst.msk [vmem:[#allocation2 + $0x60] sm:$0xf] %vm260, %v251
    %v262 = vld [vmem:[%s168 + $0x2] sm:$0xff]
    %v263 = vld [vmem:[%s168 + $0xa] sm:$0xff]
    %v264 = vld [vmem:[%s168 + $0x12] sm:$0xff]
    %v265 = vld [vmem:[%s168 + $0x1a] sm:$0x3]
    %v270 = vrot.slane %v262, 6
    %v271 = vrot.slane %v263, 6
    %v272 = vsel %vm203, %v270, %v271
    %v273 = vrot.slane %v264, 6
    %v274 = vsel %vm203, %v271, %v273
    %v275 = vrot.slane %v265, 6
    %v276 = vsel %vm203, %v273, %v275
    %277 = vrot.lane.b32.xlu0 %v270, 96
    %v278 = vpop.permute.xlu0 %277
    %279 = vrot.lane.b32.xlu0 %v272, 96
    %v280 = vpop.permute.xlu0 %279
    %281 = vrot.lane.b32.xlu0 %v274, 96
    %v282 = vpop.permute.xlu0 %281
    %283 = vrot.lane.b32.xlu0 %v276, 96
    %v284 = vpop.permute.xlu0 %283
    %vm289 = vcmask 1015554
    %290 = vst.msk [vmem:[#allocation2 + $0x30] sm:$0xfc] %vm289, %v278
    %291 = vst.msk [vmem:[#allocation2 + $0x40] sm:$0xff] %vm153, %v280
    %292 = vst.msk [vmem:[#allocation2 + $0x50] sm:$0xff] %vm153, %v282
    %vm293 = vcmask 1011456
    %294 = vst.msk [vmem:[#allocation2 + $0x60] sm:$0xf] %vm293, %v284
    %v295 = vld [vmem:[%s168 + $0x3] sm:$0xff]
    %v296 = vld [vmem:[%s168 + $0xb] sm:$0xff]
    %v297 = vld [vmem:[%s168 + $0x13] sm:$0xff]
    %v298 = vld [vmem:[%s168 + $0x1b] sm:$0x1]
    %v303 = vrot.slane %v295, 6
    %v304 = vrot.slane %v296, 6
    %v305 = vsel %vm203, %v303, %v304
    %v306 = vrot.slane %v297, 6
    %v307 = vsel %vm203, %v304, %v306
    %v308 = vrot.slane %v298, 6
    %v309 = vsel %vm203, %v306, %v308
    %vm314 = vcmask 228354
    %315 = vst.msk [vmem:[#allocation2 + $0x38] sm:$0xfc] %vm314, %v303
    %316 = vst.msk [vmem:[#allocation2 + $0x48] sm:$0xff] %vm76, %v305
    %317 = vst.msk [vmem:[#allocation2 + $0x58] sm:$0xff] %vm76, %v307
    %vm318 = vcmask 223232
    %319 = vst.msk [vmem:[#allocation2 + $0x68] sm:$0x7] %vm318, %v309
    %v320 = vld [vmem:[#allocation2] sm:$0xff]
    %v321 = vld [vmem:[#allocation2 + $0x8] sm:$0xff]
    %v322 = vld [vmem:[#allocation2 + $0x10] sm:$0xff]
    %v323 = vld [vmem:[#allocation2 + $0x18] sm:$0xff]
    %v324 = vld [vmem:[#allocation2 + $0x20] sm:$0xff]
    %v325 = vld [vmem:[#allocation2 + $0x28] sm:$0xff]
    %v326 = vld [vmem:[#allocation2 + $0x30] sm:$0xff]
    %v327 = vld [vmem:[#allocation2 + $0x38] sm:$0xff]
    %v328 = vld [vmem:[#allocation2 + $0x40] sm:$0xff]
    %v329 = vld [vmem:[#allocation2 + $0x48] sm:$0xff]
    %v330 = vld [vmem:[#allocation2 + $0x50] sm:$0xff]
    %v331 = vld [vmem:[#allocation2 + $0x58] sm:$0xff]
    %v332 = vld [vmem:[#allocation2 + $0x60] sm:$0xff]
    %v333 = vld [vmem:[#allocation2 + $0x68] sm:$0xff]
    %v334 = vld [vmem:[%s1] sm:$0xff]
    %v335 = vld [vmem:[%s1 + $0x8] sm:$0xff]
    %v336 = vld [vmem:[%s1 + $0x10] sm:$0xff]
    %v337 = vld [vmem:[%s1 + $0x18] sm:$0xff]
    %v338 = vld [vmem:[%s1 + $0x20] sm:$0xff]
    %v339 = vld [vmem:[%s1 + $0x28] sm:$0xff]
    %v340 = vld [vmem:[%s1 + $0x30] sm:$0xff]
    %v341 = vld [vmem:[%s1 + $0x38] sm:$0xff]
    %v342 = vld [vmem:[%s1 + $0x40] sm:$0xff]
    %v343 = vld [vmem:[%s1 + $0x48] sm:$0xff]
    %v344 = vld [vmem:[%s1 + $0x50] sm:$0xff]
    %v345 = vld [vmem:[%s1 + $0x58] sm:$0xff]
    %v346 = vld [vmem:[%s1 + $0x60] sm:$0xff]
    %v347 = vld [vmem:[%s1 + $0x68] sm:$0xff]
    %v348 = vld [vmem:[%s1 + $0x70] sm:$0xff]
    %v349 = vld [vmem:[%s1 + $0x78] sm:$0xff]
    %v350 = vld [vmem:[%s1 + $0x80] sm:$0xff]
    %v351 = vld [vmem:[%s1 + $0x88] sm:$0xff]
    %v352 = vld [vmem:[%s1 + $0x90] sm:$0xff]
    %v353 = vld [vmem:[%s1 + $0x98] sm:$0xff]
    %v354 = vld [vmem:[%s1 + $0xa0] sm:$0xff]
    %v355 = vld [vmem:[%s1 + $0xa8] sm:$0xff]
    %v356 = vld [vmem:[%s1 + $0xb0] sm:$0xff]
    %v357 = vld [vmem:[%s1 + $0xb8] sm:$0xff]
    %v358 = vld [vmem:[%s1 + $0xc0] sm:$0xff]
    %v359 = vld [vmem:[%s1 + $0xc8] sm:$0xff]
    %v360 = vld [vmem:[%s1 + $0xd0] sm:$0xff]
    %v361 = vld [vmem:[%s1 + $0xd8] sm:$0xff]
    %v362 = vld [vmem:[%s1 + $0xe0] sm:$0xff]
    %v363 = vld [vmem:[%s1 + $0xe8] sm:$0xff]
    %v364 = vld [vmem:[%s1 + $0xf0] sm:$0xff]
    %v365 = vld [vmem:[%s1 + $0xf8] sm:$0xff]
    %v366 = vld [vmem:[%s1 + $0x100] sm:$0xff]
    %v367 = vld [vmem:[%s1 + $0x108] sm:$0xff]
    %v368 = vld [vmem:[%s1 + $0x110] sm:$0xff]
    %v369 = vld [vmem:[%s1 + $0x118] sm:$0xff]
    %v370 = vld [vmem:[%s1 + $0x120] sm:$0xff]
    %v371 = vld [vmem:[%s1 + $0x128] sm:$0xff]
    %v372 = vld [vmem:[%s1 + $0x130] sm:$0xff]
    %v373 = vld [vmem:[%s1 + $0x138] sm:$0xff]
    %v374 = vld [vmem:[%s2] sm:$0x3]
    %v376 = vlaneseq
    %v377 = vshrl.u32 %v376, 7
    %v378 = vsub.s32 0, %v377
    %v379 = vrot.slane %v374, %v378
    %v380 = vlaneseq
    %v381 = vshrl.u32 %v380, 7
    %v382 = vsub.s32 1, %v381
    %v383 = vrot.slane %v374, %v382
    %v387 = vsel %vm40, %v321, 0
    %v390 = vsel %vm40, %v323, 0
    %v393 = vsel %vm40, %v325, 0
    %v396 = vsel %vm40, %v327, 0
    %v399 = vsel %vm40, %v329, 0
    %v402 = vsel %vm40, %v331, 0
    %v405 = vsel %vm40, %v333, 0
    %407 = vmatprep.subr.mxu0 %v335
    %408 = vmatpush1.msra.mxu0 %v334
    %409 = vmatprep.subr.mxu0 %v337
    %410 = vmatpush1.msra.mxu0 %v336
    %411 = vmatprep.subr.mxu0 %v339
    %412 = vmatpush1.msra.mxu0 %v338
    %413 = vmatprep.subr.mxu0 %v341
    %414 = vmatpush1.msra.mxu0 %v340
    %415 = vmatprep.subr.mxu0 %v343
    %416 = vmatpush1.msra.mxu0 %v342
    %417 = vmatprep.subr.mxu0 %v345
    %418 = vmatpush1.msra.mxu0 %v344
    %419 = vmatprep.subr.mxu0 %v347
    %420 = vmatpush1.msra.mxu0 %v346
    %421 = vmatprep.subr.mxu0 %v349
    %422 = vmatpush1.msra.mxu0 %v348
    %423 = vmatprep.subr.mxu0 %v351
    %424 = vmatpush1.msra.mxu0 %v350
    %425 = vmatprep.subr.mxu0 %v353
    %426 = vmatpush1.msra.mxu0 %v352
    %427 = vmatprep.subr.mxu0 %v355
    %428 = vmatpush1.msra.mxu0 %v354
    %429 = vmatprep.subr.mxu0 %v357
    %430 = vmatpush1.msra.mxu0 %v356
    %431 = vmatprep.subr.mxu0 %v359
    %432 = vmatpush1.msra.mxu0 %v358
    %433 = vmatprep.subr.mxu0 %v361
    %434 = vmatpush1.msra.mxu0 %v360
    %435 = vmatprep.subr.mxu0 %v363
    %436 = vmatpush1.msra.mxu0 %v362
    %437 = vmatprep.subr.mxu0 %v365
    %438 = vmatpush1.msra.mxu0 %v364
    %439 = vmatprep.subr.mxu0 %v367
    %440 = vmatpush1.msra.mxu0 %v366
    %441 = vmatprep.subr.mxu0 %v369
    %442 = vmatpush1.msra.mxu0 %v368
    %443 = vmatprep.subr.mxu0 %v371
    %444 = vmatpush1.msra.mxu0 %v370
    %445 = vmatprep.subr.mxu0 %v373
    %446 = vmatpush1.msra.mxu0 %v372
    %447 = vmatprep.subr.mxu0 0.0
    %448 = vmatpush1.msra.mxu0 0.0
    %449 = vmatprep.subr.mxu0 0.0
    %450 = vmatpush1.msra.mxu0 0.0
    %451 = vmatprep.subr.mxu0 0.0
    %452 = vmatpush1.msra.mxu0 0.0
    %453 = vmatprep.subr.mxu0 0.0
    %454 = vmatpush1.msra.mxu0 0.0
    %455 = vmatprep.subr.mxu0 0.0
    %456 = vmatpush1.msra.mxu0 0.0
    %457 = vmatprep.subr.mxu0 0.0
    %458 = vmatpush1.msra.mxu0 0.0
    %459 = vmatprep.subr.mxu0 0.0
    %460 = vmatpush1.msra.mxu0 0.0
    %461 = vmatprep.subr.mxu0 0.0
    %462 = vmatpush1.msra.mxu0 0.0
    %463 = vmatprep.subr.mxu0 0.0
    %464 = vmatpush1.msra.mxu0 0.0
    %465 = vmatprep.subr.mxu0 0.0
    %466 = vmatpush1.msra.mxu0 0.0
    %467 = vmatprep.subr.mxu0 0.0
    %468 = vmatpush1.msra.mxu0 0.0
    %469 = vmatprep.subr.mxu0 0.0
    %470 = vmatpush1.msra.mxu0 0.0
    %471 = vmatprep.mubr.f32.mxu0 %v387
    %472 = vmatmul.mubr.f32.gmra.mrb[0].mxu0 %v320
    %v473 = vpop.f32.mrb[0].mxu0
    %v474 = vadd.f32 %v379, %v473
    %v475 = vpop.f32.mrb[0].mxu0
    %v476 = vadd.f32 %v383, %v475
    %477 = vmatprep.mubr.f32.mxu0 %v390
    %478 = vmatmul.mubr.f32.gmra.mrb[0].mxu0 %v322
    %v479 = vpop.f32.mrb[0].mxu0
    %v480 = vadd.f32 %v379, %v479
    %v481 = vpop.f32.mrb[0].mxu0
    %v482 = vadd.f32 %v383, %v481
    %483 = vmatprep.mubr.f32.mxu0 %v393
    %484 = vmatmul.mubr.f32.gmra.mrb[0].mxu0 %v324
    %v485 = vpop.f32.mrb[0].mxu0
    %v486 = vadd.f32 %v379, %v485
    %v487 = vpop.f32.mrb[0].mxu0
    %v488 = vadd.f32 %v383, %v487
    %489 = vmatprep.mubr.f32.mxu0 %v396
    %490 = vmatmul.mubr.f32.gmra.mrb[0].mxu0 %v326
    %v491 = vpop.f32.mrb[0].mxu0
    %v492 = vadd.f32 %v379, %v491
    %v493 = vpop.f32.mrb[0].mxu0
    %v494 = vadd.f32 %v383, %v493
    %495 = vmatprep.mubr.f32.mxu0 %v399
    %496 = vmatmul.mubr.f32.gmra.mrb[0].mxu0 %v328
    %v497 = vpop.f32.mrb[0].mxu0
    %v498 = vadd.f32 %v379, %v497
    %v499 = vpop.f32.mrb[0].mxu0
    %v500 = vadd.f32 %v383, %v499
    %501 = vmatprep.mubr.f32.mxu0 %v402
    %502 = vmatmul.mubr.f32.gmra.mrb[0].mxu0 %v330
    %v503 = vpop.f32.mrb[0].mxu0
    %v504 = vadd.f32 %v379, %v503
    %v505 = vpop.f32.mrb[0].mxu0
    %v506 = vadd.f32 %v383, %v505
    %507 = vmatprep.mubr.f32.mxu0 %v405
    %508 = vmatmul.mubr.f32.gmra.mrb[0].mxu0 %v332
    %v509 = vpop.f32.mrb[0].mxu0
    %v510 = vadd.f32 %v379, %v509
    %v511 = vpop.f32.mrb[0].mxu0
    %v512 = vadd.f32 %v383, %v511
    %513 = vdwg.mxu0
    %v514 = vld [vmem:[%s3] sm:$0xff]
    %v515 = vld [vmem:[%s3 + $0x8] sm:$0xff]
    %v516 = vld [vmem:[%s3 + $0x10] sm:$0xff]
    %v517 = vld [vmem:[%s3 + $0x18] sm:$0x3]
    %vm518 = vcmask 457728
    %v520 = vsel %vm518, %v514, 0
    %v523 = vsel %vm518, %v515, 0
    %v526 = vsel %vm518, %v516, 0
    %v529 = vsel %vm518, %v517, 0
    %531 = vmatprep.subr.mxu0 %v476
    %532 = vmatpush1.msra.mxu0 %v474
    %533 = vmatprep.subr.mxu0 %v482
    %534 = vmatpush1.msra.mxu0 %v480
    %535 = vmatprep.subr.mxu0 %v488
    %536 = vmatpush1.msra.mxu0 %v486
    %537 = vmatprep.subr.mxu0 %v494
    %538 = vmatpush1.msra.mxu0 %v492
    %539 = vmatprep.subr.mxu0 %v500
    %540 = vmatpush1.msra.mxu0 %v498
    %541 = vmatprep.subr.mxu0 %v506
    %542 = vmatpush1.msra.mxu0 %v504
    %543 = vmatprep.subr.mxu0 %v512
    %544 = vmatpush1.msra.mxu0 %v510
    %545 = vmatprep.subr.mxu0 0.0
    %546 = vmatpush1.msra.mxu0 0.0
    %547 = vmatprep.subr.mxu0 0.0
    %548 = vmatpush1.msra.mxu0 0.0
    %549 = vmatprep.subr.mxu0 0.0
    %550 = vmatpush1.msra.mxu0 0.0
    %551 = vmatprep.subr.mxu0 0.0
    %552 = vmatpush1.msra.mxu0 0.0
    %553 = vmatprep.subr.mxu0 0.0
    %554 = vmatpush1.msra.mxu0 0.0
    %555 = vmatprep.subr.mxu0 0.0
    %556 = vmatpush1.msra.mxu0 0.0
    %557 = vmatprep.subr.mxu0 0.0
    %558 = vmatpush1.msra.mxu0 0.0
    %559 = vmatprep.subr.mxu0 0.0
    %560 = vmatpush1.msra.mxu0 0.0
    %561 = vmatprep.subr.mxu0 0.0
    %562 = vmatpush1.msra.mxu0 0.0
    %563 = vmatprep.subr.mxu0 0.0
    %564 = vmatpush1.msra.mxu0 0.0
    %565 = vmatprep.subr.mxu0 0.0
    %566 = vmatpush1.msra.mxu0 0.0
    %567 = vmatprep.subr.mxu0 0.0
    %568 = vmatpush1.msra.mxu0 0.0
    %569 = vmatprep.subr.mxu0 0.0
    %570 = vmatpush1.msra.mxu0 0.0
    %571 = vmatprep.subr.mxu0 0.0
    %572 = vmatpush1.msra.mxu0 0.0
    %573 = vmatprep.subr.mxu0 0.0
    %574 = vmatpush1.msra.mxu0 0.0
    %575 = vmatprep.subr.mxu0 0.0
    %576 = vmatpush1.msra.mxu0 0.0
    %577 = vmatprep.subr.mxu0 0.0
    %578 = vmatpush1.msra.mxu0 0.0
    %579 = vmatprep.subr.mxu0 0.0
    %580 = vmatpush1.msra.mxu0 0.0
    %581 = vmatprep.subr.mxu0 0.0
    %582 = vmatpush1.msra.mxu0 0.0
    %583 = vmatprep.subr.mxu0 0.0
    %584 = vmatpush1.msra.mxu0 0.0
    %585 = vmatprep.subr.mxu0 0.0
    %586 = vmatpush1.msra.mxu0 0.0
    %587 = vmatprep.subr.mxu0 0.0
    %588 = vmatpush1.msra.mxu0 0.0
    %589 = vmatprep.subr.mxu0 0.0
    %590 = vmatpush1.msra.mxu0 0.0
    %591 = vmatprep.subr.mxu0 0.0
    %592 = vmatpush1.msra.mxu0 0.0
    %593 = vmatprep.subr.mxu0 0.0
    %594 = vmatpush1.msra.mxu0 0.0
    %595 = vmatprep.mubr.f32.mxu0 0.0
    %596 = vmatmul.mubr.f32.gmra.mrb[0].mxu0 %v520
    %v597 = vpop.f32.mrb[0].mxu0
    %v598 = vadd.f32 0.0, %v597
    %v599 = vpop.f32.mrb[0].mxu0
    %v600 = vadd.f32 0.0, %v599
    %601 = vmatprep.mubr.f32.mxu0 0.0
    %602 = vmatmul.mubr.f32.gmra.mrb[0].mxu0 %v523
    %v603 = vpop.f32.mrb[0].mxu0
    %v604 = vadd.f32 0.0, %v603
    %v605 = vpop.f32.mrb[0].mxu0
    %v606 = vadd.f32 0.0, %v605
    %607 = vmatprep.mubr.f32.mxu0 0.0
    %608 = vmatmul.mubr.f32.gmra.mrb[0].mxu0 %v526
    %v609 = vpop.f32.mrb[0].mxu0
    %v610 = vadd.f32 0.0, %v609
    %v611 = vpop.f32.mrb[0].mxu0
    %v612 = vadd.f32 0.0, %v611
    %613 = vmatprep.mubr.f32.mxu0 0.0
    %614 = vmatmul.mubr.f32.gmra.mrb[0].mxu0 %v529
    %v615 = vpop.f32.mrb[0].mxu0
    %v616 = vadd.f32 0.0, %v615
    %v617 = vpop.f32.mrb[0].mxu0
    %v618 = vadd.f32 0.0, %v617
    %619 = vdwg.mxu0
    %s620 = scalar_lea.vmem %s3, 32
    %v621 = vld [vmem:[%s620] sm:$0xff]
    %v622 = vld [vmem:[%s620 + $0x8] sm:$0xff]
    %v623 = vld [vmem:[%s620 + $0x10] sm:$0xff]
    %v624 = vld [vmem:[%s620 + $0x18] sm:$0x3]
    %v626 = vsel %vm518, %v621, 0
    %v629 = vsel %vm518, %v622, 0
    %v632 = vsel %vm518, %v623, 0
    %v635 = vsel %vm518, %v624, 0
    %637 = vmatprep.subr.mxu0 %v476
    %638 = vmatpush1.msra.mxu0 %v474
    %639 = vmatprep.subr.mxu0 %v482
    %640 = vmatpush1.msra.mxu0 %v480
    %641 = vmatprep.subr.mxu0 %v488
    %642 = vmatpush1.msra.mxu0 %v486
    %643 = vmatprep.subr.mxu0 %v494
    %644 = vmatpush1.msra.mxu0 %v492
    %645 = vmatprep.subr.mxu0 %v500
    %646 = vmatpush1.msra.mxu0 %v498
    %647 = vmatprep.subr.mxu0 %v506
    %648 = vmatpush1.msra.mxu0 %v504
    %649 = vmatprep.subr.mxu0 %v512
    %650 = vmatpush1.msra.mxu0 %v510
    %651 = vmatprep.subr.mxu0 0.0
    %652 = vmatpush1.msra.mxu0 0.0
    %653 = vmatprep.subr.mxu0 0.0
    %654 = vmatpush1.msra.mxu0 0.0
    %655 = vmatprep.subr.mxu0 0.0
    %656 = vmatpush1.msra.mxu0 0.0
    %657 = vmatprep.subr.mxu0 0.0
    %658 = vmatpush1.msra.mxu0 0.0
    %659 = vmatprep.subr.mxu0 0.0
    %660 = vmatpush1.msra.mxu0 0.0
    %661 = vmatprep.subr.mxu0 0.0
    %662 = vmatpush1.msra.mxu0 0.0
    %663 = vmatprep.subr.mxu0 0.0
    %664 = vmatpush1.msra.mxu0 0.0
    %665 = vmatprep.subr.mxu0 0.0
    %666 = vmatpush1.msra.mxu0 0.0
    %667 = vmatprep.subr.mxu0 0.0
    %668 = vmatpush1.msra.mxu0 0.0
    %669 = vmatprep.subr.mxu0 0.0
    %670 = vmatpush1.msra.mxu0 0.0
    %671 = vmatprep.subr.mxu0 0.0
    %672 = vmatpush1.msra.mxu0 0.0
    %673 = vmatprep.subr.mxu0 0.0
    %674 = vmatpush1.msra.mxu0 0.0
    %675 = vmatprep.subr.mxu0 0.0
    %676 = vmatpush1.msra.mxu0 0.0
    %677 = vmatprep.subr.mxu0 0.0
    %678 = vmatpush1.msra.mxu0 0.0
    %679 = vmatprep.subr.mxu0 0.0
    %680 = vmatpush1.msra.mxu0 0.0
    %681 = vmatprep.subr.mxu0 0.0
    %682 = vmatpush1.msra.mxu0 0.0
    %683 = vmatprep.subr.mxu0 0.0
    %684 = vmatpush1.msra.mxu0 0.0
    %685 = vmatprep.subr.mxu0 0.0
    %686 = vmatpush1.msra.mxu0 0.0
    %687 = vmatprep.subr.mxu0 0.0
    %688 = vmatpush1.msra.mxu0 0.0
    %689 = vmatprep.subr.mxu0 0.0
    %690 = vmatpush1.msra.mxu0 0.0
    %691 = vmatprep.subr.mxu0 0.0
    %692 = vmatpush1.msra.mxu0 0.0
    %693 = vmatprep.subr.mxu0 0.0
    %694 = vmatpush1.msra.mxu0 0.0
    %695 = vmatprep.subr.mxu0 0.0
    %696 = vmatpush1.msra.mxu0 0.0
    %697 = vmatprep.subr.mxu0 0.0
    %698 = vmatpush1.msra.mxu0 0.0
    %699 = vmatprep.subr.mxu0 0.0
    %700 = vmatpush1.msra.mxu0 0.0
    %701 = vmatprep.mubr.f32.mxu0 0.0
    %702 = vmatmul.mubr.f32.gmra.mrb[0].mxu0 %v626
    %v703 = vpop.f32.mrb[0].mxu0
    %v704 = vadd.f32 0.0, %v703
    %v705 = vpop.f32.mrb[0].mxu0
    %v706 = vadd.f32 0.0, %v705
    %707 = vmatprep.mubr.f32.mxu0 0.0
    %708 = vmatmul.mubr.f32.gmra.mrb[0].mxu0 %v629
    %v709 = vpop.f32.mrb[0].mxu0
    %v710 = vadd.f32 0.0, %v709
    %v711 = vpop.f32.mrb[0].mxu0
    %v712 = vadd.f32 0.0, %v711
    %713 = vmatprep.mubr.f32.mxu0 0.0
    %714 = vmatmul.mubr.f32.gmra.mrb[0].mxu0 %v632
    %v715 = vpop.f32.mrb[0].mxu0
    %v716 = vadd.f32 0.0, %v715
    %v717 = vpop.f32.mrb[0].mxu0
    %v718 = vadd.f32 0.0, %v717
    %719 = vmatprep.mubr.f32.mxu0 0.0
    %720 = vmatmul.mubr.f32.gmra.mrb[0].mxu0 %v635
    %v721 = vpop.f32.mrb[0].mxu0
    %v722 = vadd.f32 0.0, %v721
    %v723 = vpop.f32.mrb[0].mxu0
    %v724 = vadd.f32 0.0, %v723
    %725 = vdwg.mxu0
    %v726 = vmax.f32 %v598, %v704
    %v727 = vmax.f32 %v600, %v706
    %v728 = vmax.f32 %v604, %v710
    %v729 = vmax.f32 %v606, %v712
    %v730 = vmax.f32 %v610, %v716
    %v731 = vmax.f32 %v612, %v718
    %v732 = vmax.f32 %v616, %v722
    %v733 = vmax.f32 %v618, %v724
    %v734 = vld [vmem:[%s4] sm:$0xff]
    %v735 = vld [vmem:[%s4 + $0x8] sm:$0xff]
    %v736 = vld [vmem:[%s4 + $0x10] sm:$0xff]
    %v737 = vld [vmem:[%s4 + $0x18] sm:$0xff]
    %v738 = vld [vmem:[%s4 + $0x20] sm:$0xff]
    %v739 = vld [vmem:[%s4 + $0x28] sm:$0xff]
    %v740 = vld [vmem:[%s4 + $0x30] sm:$0xff]
    %v741 = vld [vmem:[%s4 + $0x38] sm:$0xff]
    %v742 = vld [vmem:[%s4 + $0x40] sm:$0xff]
    %v743 = vld [vmem:[%s4 + $0x48] sm:$0xff]
    %v744 = vld [vmem:[%s4 + $0x50] sm:$0xff]
    %v745 = vld [vmem:[%s4 + $0x58] sm:$0xff]
    %v746 = vld [vmem:[%s4 + $0x60] sm:$0xff]
    %v747 = vld [vmem:[%s4 + $0x68] sm:$0xff]
    %v748 = vld [vmem:[%s4 + $0x70] sm:$0xff]
    %v749 = vld [vmem:[%s4 + $0x78] sm:$0xff]
    %v750 = vld [vmem:[%s4 + $0x80] sm:$0xff]
    %v751 = vld [vmem:[%s4 + $0x88] sm:$0xff]
    %v752 = vld [vmem:[%s4 + $0x90] sm:$0xff]
    %v753 = vld [vmem:[%s4 + $0x98] sm:$0xf]
    %v755 = vsel %vm76, %v727, 0
    %v758 = vsel %vm76, %v729, 0
    %v761 = vsel %vm76, %v731, 0
    %v764 = vsel %vm76, %v733, 0
    %vm766 = vcmask 1043456
    %v768 = vsel %vm766, %v753, 0
    %770 = vmatprep.subr.mxu0 0.0
    %771 = vmatpush1.msra.mxu0 %v734
    %772 = vmatprep.subr.mxu0 0.0
    %773 = vmatpush1.msra.mxu0 %v735
    %774 = vmatprep.subr.mxu0 0.0
    %775 = vmatpush1.msra.mxu0 %v736
    %776 = vmatprep.subr.mxu0 0.0
    %777 = vmatpush1.msra.mxu0 %v737
    %778 = vmatprep.subr.mxu0 0.0
    %779 = vmatpush1.msra.mxu0 %v738
    %780 = vmatprep.subr.mxu0 0.0
    %781 = vmatpush1.msra.mxu0 %v739
    %782 = vmatprep.subr.mxu0 0.0
    %783 = vmatpush1.msra.mxu0 %v740
    %784 = vmatprep.subr.mxu0 0.0
    %785 = vmatpush1.msra.mxu0 %v741
    %786 = vmatprep.subr.mxu0 0.0
    %787 = vmatpush1.msra.mxu0 %v742
    %788 = vmatprep.subr.mxu0 0.0
    %789 = vmatpush1.msra.mxu0 %v743
    %790 = vmatprep.subr.mxu0 0.0
    %791 = vmatpush1.msra.mxu0 %v744
    %792 = vmatprep.subr.mxu0 0.0
    %793 = vmatpush1.msra.mxu0 %v745
    %794 = vmatprep.subr.mxu0 0.0
    %795 = vmatpush1.msra.mxu0 %v746
    %796 = vmatprep.subr.mxu0 0.0
    %797 = vmatpush1.msra.mxu0 %v747
    %798 = vmatprep.subr.mxu0 0.0
    %799 = vmatpush1.msra.mxu0 %v748
    %800 = vmatprep.subr.mxu0 0.0
    %801 = vmatpush1.msra.mxu0 %v749
    %802 = vmatprep.subr.mxu0 0.0
    %803 = vmatpush1.msra.mxu0 %v750
    %804 = vmatprep.subr.mxu0 0.0
    %805 = vmatpush1.msra.mxu0 %v751
    %806 = vmatprep.subr.mxu0 0.0
    %807 = vmatpush1.msra.mxu0 %v752
    %808 = vmatprep.subr.mxu0 0.0
    %809 = vmatpush1.msra.mxu0 %v768
    %810 = vmatprep.subr.mxu0 0.0
    %811 = vmatpush1.msra.mxu0 0.0
    %812 = vmatprep.subr.mxu0 0.0
    %813 = vmatpush1.msra.mxu0 0.0
    %814 = vmatprep.subr.mxu0 0.0
    %815 = vmatpush1.msra.mxu0 0.0
    %816 = vmatprep.subr.mxu0 0.0
    %817 = vmatpush1.msra.mxu0 0.0
    %818 = vmatprep.subr.mxu0 0.0
    %819 = vmatpush1.msra.mxu0 0.0
    %820 = vmatprep.subr.mxu0 0.0
    %821 = vmatpush1.msra.mxu0 0.0
    %822 = vmatprep.subr.mxu0 0.0
    %823 = vmatpush1.msra.mxu0 0.0
    %824 = vmatprep.subr.mxu0 0.0
    %825 = vmatpush1.msra.mxu0 0.0
    %826 = vmatprep.subr.mxu0 0.0
    %827 = vmatpush1.msra.mxu0 0.0
    %828 = vmatprep.subr.mxu0 0.0
    %829 = vmatpush1.msra.mxu0 0.0
    %830 = vmatprep.subr.mxu0 0.0
    %831 = vmatpush1.msra.mxu0 0.0
    %832 = vmatprep.subr.mxu0 0.0
    %833 = vmatpush1.msra.mxu0 0.0
    %834 = vmatprep.mubr.f32.mxu0 %v755
    %835 = vmatmul.mubr.f32.gmra.mrb[0].mxu0 %v726
    %v836 = vpop.f32.mrb[0].mxu0
    %v837 = vadd.f32 0.0, %v836
    %v838 = vpop.f32.mrb[0].mxu0
    %839 = vmatprep.mubr.f32.mxu0 %v758
    %840 = vmatmul.mubr.f32.gmra.mrb[0].mxu0 %v728
    %v841 = vpop.f32.mrb[0].mxu0
    %v842 = vadd.f32 0.0, %v841
    %v843 = vpop.f32.mrb[0].mxu0
    %844 = vmatprep.mubr.f32.mxu0 %v761
    %845 = vmatmul.mubr.f32.gmra.mrb[0].mxu0 %v730
    %v846 = vpop.f32.mrb[0].mxu0
    %v847 = vadd.f32 0.0, %v846
    %v848 = vpop.f32.mrb[0].mxu0
    %849 = vmatprep.mubr.f32.mxu0 %v764
    %850 = vmatmul.mubr.f32.gmra.mrb[0].mxu0 %v732
    %v851 = vpop.f32.mrb[0].mxu0
    %v852 = vadd.f32 0.0, %v851
    %v853 = vpop.f32.mrb[0].mxu0
    %854 = vdwg.mxu0
    %s855 = scalar_lea.vmem %s4, 160
    %v856 = vld [vmem:[%s855] sm:$0xff]
    %v857 = vld [vmem:[%s855 + $0x8] sm:$0xff]
    %v858 = vld [vmem:[%s855 + $0x10] sm:$0xff]
    %v859 = vld [vmem:[%s855 + $0x18] sm:$0xff]
    %v860 = vld [vmem:[%s855 + $0x20] sm:$0xff]
    %v861 = vld [vmem:[%s855 + $0x28] sm:$0xff]
    %v862 = vld [vmem:[%s855 + $0x30] sm:$0xff]
    %v863 = vld [vmem:[%s855 + $0x38] sm:$0xff]
    %v864 = vld [vmem:[%s855 + $0x40] sm:$0xff]
    %v865 = vld [vmem:[%s855 + $0x48] sm:$0xff]
    %v866 = vld [vmem:[%s855 + $0x50] sm:$0xff]
    %v867 = vld [vmem:[%s855 + $0x58] sm:$0xff]
    %v868 = vld [vmem:[%s855 + $0x60] sm:$0xff]
    %v869 = vld [vmem:[%s855 + $0x68] sm:$0xff]
    %v870 = vld [vmem:[%s855 + $0x70] sm:$0xff]
    %v871 = vld [vmem:[%s855 + $0x78] sm:$0xff]
    %v872 = vld [vmem:[%s855 + $0x80] sm:$0xff]
    %v873 = vld [vmem:[%s855 + $0x88] sm:$0xff]
    %v874 = vld [vmem:[%s855 + $0x90] sm:$0xff]
    %v875 = vld [vmem:[%s855 + $0x98] sm:$0xf]
    %v877 = vsel %vm766, %v875, 0
    %879 = vmatprep.subr.mxu0 0.0
    %880 = vmatpush1.msra.mxu0 %v856
    %881 = vmatprep.subr.mxu0 0.0
    %882 = vmatpush1.msra.mxu0 %v857
    %883 = vmatprep.subr.mxu0 0.0
    %884 = vmatpush1.msra.mxu0 %v858
    %885 = vmatprep.subr.mxu0 0.0
    %886 = vmatpush1.msra.mxu0 %v859
    %887 = vmatprep.subr.mxu0 0.0
    %888 = vmatpush1.msra.mxu0 %v860
    %889 = vmatprep.subr.mxu0 0.0
    %890 = vmatpush1.msra.mxu0 %v861
    %891 = vmatprep.subr.mxu0 0.0
    %892 = vmatpush1.msra.mxu0 %v862
    %893 = vmatprep.subr.mxu0 0.0
    %894 = vmatpush1.msra.mxu0 %v863
    %895 = vmatprep.subr.mxu0 0.0
    %896 = vmatpush1.msra.mxu0 %v864
    %897 = vmatprep.subr.mxu0 0.0
    %898 = vmatpush1.msra.mxu0 %v865
    %899 = vmatprep.subr.mxu0 0.0
    %900 = vmatpush1.msra.mxu0 %v866
    %901 = vmatprep.subr.mxu0 0.0
    %902 = vmatpush1.msra.mxu0 %v867
    %903 = vmatprep.subr.mxu0 0.0
    %904 = vmatpush1.msra.mxu0 %v868
    %905 = vmatprep.subr.mxu0 0.0
    %906 = vmatpush1.msra.mxu0 %v869
    %907 = vmatprep.subr.mxu0 0.0
    %908 = vmatpush1.msra.mxu0 %v870
    %909 = vmatprep.subr.mxu0 0.0
    %910 = vmatpush1.msra.mxu0 %v871
    %911 = vmatprep.subr.mxu0 0.0
    %912 = vmatpush1.msra.mxu0 %v872
    %913 = vmatprep.subr.mxu0 0.0
    %914 = vmatpush1.msra.mxu0 %v873
    %915 = vmatprep.subr.mxu0 0.0
    %916 = vmatpush1.msra.mxu0 %v874
    %917 = vmatprep.subr.mxu0 0.0
    %918 = vmatpush1.msra.mxu0 %v877
    %919 = vmatprep.subr.mxu0 0.0
    %920 = vmatpush1.msra.mxu0 0.0
    %921 = vmatprep.subr.mxu0 0.0
    %922 = vmatpush1.msra.mxu0 0.0
    %923 = vmatprep.subr.mxu0 0.0
    %924 = vmatpush1.msra.mxu0 0.0
    %925 = vmatprep.subr.mxu0 0.0
    %926 = vmatpush1.msra.mxu0 0.0
    %927 = vmatprep.subr.mxu0 0.0
    %928 = vmatpush1.msra.mxu0 0.0
    %929 = vmatprep.subr.mxu0 0.0
    %930 = vmatpush1.msra.mxu0 0.0
    %931 = vmatprep.subr.mxu0 0.0
    %932 = vmatpush1.msra.mxu0 0.0
    %933 = vmatprep.subr.mxu0 0.0
    %934 = vmatpush1.msra.mxu0 0.0
    %935 = vmatprep.subr.mxu0 0.0
    %936 = vmatpush1.msra.mxu0 0.0
    %937 = vmatprep.subr.mxu0 0.0
    %938 = vmatpush1.msra.mxu0 0.0
    %939 = vmatprep.subr.mxu0 0.0
    %940 = vmatpush1.msra.mxu0 0.0
    %941 = vmatprep.subr.mxu0 0.0
    %942 = vmatpush1.msra.mxu0 0.0
    %943 = vmatprep.mubr.f32.mxu0 %v755
    %944 = vmatmul.mubr.f32.gmra.mrb[0].mxu0 %v726
    %v945 = vpop.f32.mrb[0].mxu0
    %v946 = vadd.f32 0.0, %v945
    %v947 = vpop.f32.mrb[0].mxu0
    %948 = vmatprep.mubr.f32.mxu0 %v758
    %949 = vmatmul.mubr.f32.gmra.mrb[0].mxu0 %v728
    %v950 = vpop.f32.mrb[0].mxu0
    %v951 = vadd.f32 0.0, %v950
    %v952 = vpop.f32.mrb[0].mxu0
    %953 = vmatprep.mubr.f32.mxu0 %v761
    %954 = vmatmul.mubr.f32.gmra.mrb[0].mxu0 %v730
    %v955 = vpop.f32.mrb[0].mxu0
    %v956 = vadd.f32 0.0, %v955
    %v957 = vpop.f32.mrb[0].mxu0
    %958 = vmatprep.mubr.f32.mxu0 %v764
    %959 = vmatmul.mubr.f32.gmra.mrb[0].mxu0 %v732
    %v960 = vpop.f32.mrb[0].mxu0
    %v961 = vadd.f32 0.0, %v960
    %v962 = vpop.f32.mrb[0].mxu0
    %963 = vdwg.mxu0
    %v964 = vmax.f32 %v837, %v946
    %v965 = vmax.f32 %v842, %v951
    %v966 = vmax.f32 %v847, %v956
    %v967 = vmax.f32 %v852, %v961
    %968 = vst [vmem:[#allocation3] sm:$0xff] %v964
    %969 = vst [vmem:[#allocation3 + $0x8] sm:$0xff] %v965
    %970 = vst [vmem:[#allocation3 + $0x10] sm:$0xff] %v966
    %971 = vst [vmem:[#allocation3 + $0x18] sm:$0x3] %v967
    %972 = vst [vmem:[#allocation4] sm:$0xff] 0.0
    %973 = vst [vmem:[#allocation4 + $0x8] sm:$0xff] 0.0
    %974 = vst [vmem:[#allocation4 + $0x10] sm:$0xff] 0.0
    %975 = vst [vmem:[#allocation4 + $0x18] sm:$0xff] 0.0
    %976 = vst [vmem:[#allocation4 + $0x20] sm:$0xff] 0.0
    %977 = vst [vmem:[#allocation4 + $0x28] sm:$0xff] 0.0
    %978 = vst [vmem:[#allocation4 + $0x30] sm:$0xff] 0.0
    %979 = vst [vmem:[#allocation4 + $0x38] sm:$0xff] 0.0
    %980 = vst [vmem:[#allocation4 + $0x40] sm:$0xff] 0.0
    %981 = vst [vmem:[#allocation4 + $0x48] sm:$0xff] 0.0
    %982 = vst [vmem:[#allocation4 + $0x50] sm:$0xff] 0.0
    %983 = vst [vmem:[#allocation4 + $0x58] sm:$0xff] 0.0
    %984 = vst [vmem:[#allocation4 + $0x60] sm:$0xff] 0.0
    %985 = vst [vmem:[#allocation4 + $0x68] sm:$0xff] 0.0
    %986 = vst [vmem:[#allocation4 + $0x70] sm:$0xff] 0.0
    %v987 = vld [vmem:[#allocation3] sm:$0xff]
    %v988 = vld [vmem:[#allocation3 + $0x8] sm:$0x1]
    %989 = vst [vmem:[#allocation4] sm:$0xff] %v987
    %990 = vst [vmem:[#allocation4 + $0x28] sm:$0x1] %v988
    %v991 = vld [vmem:[#allocation3 + $0x1] sm:$0xff]
    %v992 = vld [vmem:[#allocation3 + $0x9] sm:$0x1]
    %993 = vst [vmem:[#allocation4 + $0x8] sm:$0xff] %v991
    %994 = vst [vmem:[#allocation4 + $0x30] sm:$0x1] %v992
    %v995 = vld [vmem:[#allocation3 + $0x2] sm:$0xff]
    %v996 = vld [vmem:[#allocation3 + $0xa] sm:$0x1]
    %997 = vst [vmem:[#allocation4 + $0x10] sm:$0xff] %v995
    %998 = vst [vmem:[#allocation4 + $0x38] sm:$0x1] %v996
    %v999 = vld [vmem:[#allocation3 + $0x3] sm:$0xff]
    %v1000 = vld [vmem:[#allocation3 + $0xb] sm:$0x1]
    %1001 = vst [vmem:[#allocation4 + $0x18] sm:$0xff] %v999
    %1002 = vst [vmem:[#allocation4 + $0x40] sm:$0x1] %v1000
    %v1003 = vld [vmem:[#allocation3 + $0x4] sm:$0xff]
    %v1004 = vld [vmem:[#allocation3 + $0xc] sm:$0x1]
    %1005 = vst [vmem:[#allocation4 + $0x20] sm:$0xff] %v1003
    %1006 = vst [vmem:[#allocation4 + $0x48] sm:$0x1] %v1004
    %v1007 = vld [vmem:[#allocation3 + $0xd] sm:$0xff]
    %v1008 = vld [vmem:[#allocation3 + $0x15] sm:$0x1]
    %v1011 = vrot.slane %v1007, 7
    %v1012 = vrot.slane %v1008, 7
    %v1013 = vsel %vm62, %v1011, %v1012
    %1016 = vst [vmem:[#allocation4 + $0x28] sm:$0xfe] %v1011
    %1017 = vst [vmem:[#allocation4 + $0x50] sm:$0x3] %v1013
    %v1018 = vld [vmem:[#allocation3 + $0xe] sm:$0xff]
    %v1019 = vld [vmem:[#allocation3 + $0x16] sm:$0x1]
    %v1022 = vrot.slane %v1018, 7
    %v1023 = vrot.slane %v1019, 7
    %v1024 = vsel %vm62, %v1022, %v1023
    %1027 = vst [vmem:[#allocation4 + $0x30] sm:$0xfe] %v1022
    %1028 = vst [vmem:[#allocation4 + $0x58] sm:$0x3] %v1024
    %v1029 = vld [vmem:[#allocation3 + $0xf] sm:$0xff]
    %v1030 = vld [vmem:[#allocation3 + $0x17] sm:$0x1]
    %v1033 = vrot.slane %v1029, 7
    %v1034 = vrot.slane %v1030, 7
    %v1035 = vsel %vm62, %v1033, %v1034
    %1038 = vst [vmem:[#allocation4 + $0x38] sm:$0xfe] %v1033
    %1039 = vst [vmem:[#allocation4 + $0x60] sm:$0x3] %v1035
    %v1040 = vld [vmem:[#allocation3 + $0x10] sm:$0xff]
    %v1041 = vld [vmem:[#allocation3 + $0x18] sm:$0x1]
    %v1044 = vrot.slane %v1040, 7
    %v1045 = vrot.slane %v1041, 7
    %v1046 = vsel %vm62, %v1044, %v1045
    %1049 = vst [vmem:[#allocation4 + $0x40] sm:$0xfe] %v1044
    %1050 = vst [vmem:[#allocation4 + $0x68] sm:$0x3] %v1046
    %v1051 = vld [vmem:[#allocation3 + $0x11] sm:$0xff]
    %v1052 = vld [vmem:[#allocation3 + $0x19] sm:$0x1]
    %v1055 = vrot.slane %v1051, 7
    %v1056 = vrot.slane %v1052, 7
    %v1057 = vsel %vm62, %v1055, %v1056
    %1060 = vst [vmem:[#allocation4 + $0x48] sm:$0xfe] %v1055
    %1061 = vst [vmem:[#allocation4 + $0x70] sm:$0x3] %v1057
    %v1062 = vld [vmem:[#allocation4] sm:$0xff]
    %v1063 = vld [vmem:[#allocation4 + $0x8] sm:$0xff]
    %v1064 = vld [vmem:[#allocation4 + $0x10] sm:$0xff]
    %v1065 = vld [vmem:[#allocation4 + $0x18] sm:$0xff]
    %v1066 = vld [vmem:[#allocation4 + $0x20] sm:$0xff]
    %v1067 = vld [vmem:[#allocation4 + $0x28] sm:$0xff]
    %v1068 = vld [vmem:[#allocation4 + $0x30] sm:$0xff]
    %v1069 = vld [vmem:[#allocation4 + $0x38] sm:$0xff]
    %v1070 = vld [vmem:[#allocation4 + $0x40] sm:$0xff]
    %v1071 = vld [vmem:[#allocation4 + $0x48] sm:$0xff]
    %v1072 = vld [vmem:[#allocation4 + $0x50] sm:$0xff]
    %v1073 = vld [vmem:[#allocation4 + $0x58] sm:$0xff]
    %v1074 = vld [vmem:[#allocation4 + $0x60] sm:$0xff]
    %v1075 = vld [vmem:[#allocation4 + $0x68] sm:$0xff]
    %v1076 = vld [vmem:[#allocation4 + $0x70] sm:$0xff]
    %v1077 = vld [vmem:[%s5] sm:$0xff]
    %v1078 = vld [vmem:[%s5 + $0x8] sm:$0xff]
    %v1079 = vld [vmem:[%s5 + $0x10] sm:$0xff]
    %v1080 = vld [vmem:[%s5 + $0x18] sm:$0xff]
    %v1081 = vld [vmem:[%s5 + $0x20] sm:$0xff]
    %v1082 = vld [vmem:[%s5 + $0x28] sm:$0xff]
    %v1083 = vld [vmem:[%s5 + $0x30] sm:$0xff]
    %v1084 = vld [vmem:[%s5 + $0x38] sm:$0xff]
    %v1085 = vld [vmem:[%s5 + $0x40] sm:$0xff]
    %v1086 = vld [vmem:[%s5 + $0x48] sm:$0xff]
    %v1087 = vld [vmem:[%s5 + $0x50] sm:$0xff]
    %v1088 = vld [vmem:[%s5 + $0x58] sm:$0xff]
    %v1089 = vld [vmem:[%s5 + $0x60] sm:$0xff]
    %v1090 = vld [vmem:[%s5 + $0x68] sm:$0xff]
    %v1091 = vld [vmem:[%s5 + $0x70] sm:$0xff]
    %v1092 = vld [vmem:[%s5 + $0x78] sm:$0xff]
    %v1093 = vld [vmem:[%s5 + $0x80] sm:$0xff]
    %v1094 = vld [vmem:[%s5 + $0x88] sm:$0xff]
    %v1095 = vld [vmem:[%s5 + $0x90] sm:$0xff]
    %v1096 = vld [vmem:[%s5 + $0x98] sm:$0xff]
    %v1097 = vld [vmem:[%s5 + $0xa0] sm:$0xff]
    %v1098 = vld [vmem:[%s5 + $0xa8] sm:$0xff]
    %v1099 = vld [vmem:[%s5 + $0xb0] sm:$0xff]
    %v1100 = vld [vmem:[%s5 + $0xb8] sm:$0xff]
    %v1101 = vld [vmem:[%s5 + $0xc0] sm:$0xff]
    %v1102 = vld [vmem:[%s5 + $0xc8] sm:$0xff]
    %v1103 = vld [vmem:[%s5 + $0xd0] sm:$0xff]
    %v1104 = vld [vmem:[%s5 + $0xd8] sm:$0xff]
    %v1105 = vld [vmem:[%s5 + $0xe0] sm:$0xff]
    %v1106 = vld [vmem:[%s5 + $0xe8] sm:$0xff]
    %v1107 = vld [vmem:[%s5 + $0xf0] sm:$0xff]
    %v1108 = vld [vmem:[%s5 + $0xf8] sm:$0xff]
    %v1109 = vld [vmem:[%s5 + $0x100] sm:$0xff]
    %v1110 = vld [vmem:[%s5 + $0x108] sm:$0xff]
    %v1111 = vld [vmem:[%s5 + $0x110] sm:$0xff]
    %v1112 = vld [vmem:[%s5 + $0x118] sm:$0xff]
    %v1113 = vld [vmem:[%s5 + $0x120] sm:$0xff]
    %v1114 = vld [vmem:[%s5 + $0x128] sm:$0xff]
    %v1115 = vld [vmem:[%s5 + $0x130] sm:$0xff]
    %v1116 = vld [vmem:[%s5 + $0x138] sm:$0xff]
    %v1117 = vld [vmem:[%s5 + $0x140] sm:$0xff]
    %v1118 = vld [vmem:[%s5 + $0x148] sm:$0xff]
    %v1119 = vld [vmem:[%s5 + $0x150] sm:$0xff]
    %v1120 = vld [vmem:[%s5 + $0x158] sm:$0xff]
    %v1121 = vld [vmem:[%s5 + $0x160] sm:$0xff]
    %v1122 = vld [vmem:[%s5 + $0x168] sm:$0xff]
    %v1123 = vld [vmem:[%s5 + $0x170] sm:$0xff]
    %v1124 = vld [vmem:[%s5 + $0x178] sm:$0xff]
    %v1125 = vld [vmem:[%s5 + $0x180] sm:$0xff]
    %v1126 = vld [vmem:[%s5 + $0x188] sm:$0xff]
    %v1127 = vld [vmem:[%s5 + $0x190] sm:$0xff]
    %v1128 = vld [vmem:[%s5 + $0x198] sm:$0xff]
    %v1129 = vld [vmem:[%s5 + $0x1a0] sm:$0xff]
    %v1130 = vld [vmem:[%s5 + $0x1a8] sm:$0xff]
    %v1131 = vld [vmem:[%s5 + $0x1b0] sm:$0xff]
    %v1132 = vld [vmem:[%s5 + $0x1b8] sm:$0xff]
    %v1133 = vld [vmem:[%s5 + $0x1c0] sm:$0xff]
    %v1134 = vld [vmem:[%s5 + $0x1c8] sm:$0xff]
    %v1135 = vld [vmem:[%s5 + $0x1d0] sm:$0xff]
    %v1136 = vld [vmem:[%s5 + $0x1d8] sm:$0xff]
    %v1137 = vld [vmem:[%s5 + $0x1e0] sm:$0xff]
    %v1138 = vld [vmem:[%s5 + $0x1e8] sm:$0xff]
    %v1139 = vld [vmem:[%s5 + $0x1f0] sm:$0xff]
    %v1140 = vld [vmem:[%s5 + $0x1f8] sm:$0xff]
    %v1141 = vld [vmem:[%s5 + $0x200] sm:$0xff]
    %v1142 = vld [vmem:[%s5 + $0x208] sm:$0xff]
    %v1143 = vld [vmem:[%s5 + $0x210] sm:$0xff]
    %v1144 = vld [vmem:[%s5 + $0x218] sm:$0xff]
    %v1145 = vld [vmem:[%s5 + $0x220] sm:$0xff]
    %v1146 = vld [vmem:[%s5 + $0x228] sm:$0xff]
    %v1147 = vld [vmem:[%s5 + $0x230] sm:$0xff]
    %v1148 = vld [vmem:[%s5 + $0x238] sm:$0xff]
    %v1149 = vld [vmem:[%s5 + $0x240] sm:$0xff]
    %v1150 = vld [vmem:[%s5 + $0x248] sm:$0xff]
    %v1151 = vld [vmem:[%s5 + $0x250] sm:$0xff]
    %v1152 = vld [vmem:[%s5 + $0x258] sm:$0xff]
    %v1153 = vld [vmem:[%s5 + $0x260] sm:$0xff]
    %v1154 = vld [vmem:[%s5 + $0x268] sm:$0xff]
    %v1155 = vld [vmem:[%s5 + $0x270] sm:$0xff]
    %v1156 = vld [vmem:[%s5 + $0x278] sm:$0xff]
    %v1157 = vld [vmem:[%s5 + $0x280] sm:$0xff]
    %v1158 = vld [vmem:[%s5 + $0x288] sm:$0xff]
    %v1159 = vld [vmem:[%s5 + $0x290] sm:$0xff]
    %v1160 = vld [vmem:[%s5 + $0x298] sm:$0xff]
    %v1161 = vld [vmem:[%s5 + $0x2a0] sm:$0xff]
    %v1162 = vld [vmem:[%s5 + $0x2a8] sm:$0xff]
    %v1163 = vld [vmem:[%s5 + $0x2b0] sm:$0xff]
    %v1164 = vld [vmem:[%s5 + $0x2b8] sm:$0xff]
    %v1165 = vld [vmem:[%s5 + $0x2c0] sm:$0xff]
    %v1166 = vld [vmem:[%s5 + $0x2c8] sm:$0xff]
    %v1167 = vld [vmem:[%s5 + $0x2d0] sm:$0xff]
    %v1168 = vld [vmem:[%s5 + $0x2d8] sm:$0xff]
    %v1169 = vld [vmem:[%s5 + $0x2e0] sm:$0xff]
    %v1170 = vld [vmem:[%s5 + $0x2e8] sm:$0xff]
    %v1171 = vld [vmem:[%s5 + $0x2f0] sm:$0xff]
    %v1172 = vld [vmem:[%s5 + $0x2f8] sm:$0xff]
    %v1173 = vld [vmem:[%s5 + $0x300] sm:$0xff]
    %v1174 = vld [vmem:[%s5 + $0x308] sm:$0xff]
    %v1175 = vld [vmem:[%s5 + $0x310] sm:$0xff]
    %v1176 = vld [vmem:[%s5 + $0x318] sm:$0xff]
    %v1177 = vld [vmem:[%s5 + $0x320] sm:$0xff]
    %v1178 = vld [vmem:[%s5 + $0x328] sm:$0xff]
    %v1179 = vld [vmem:[%s5 + $0x330] sm:$0xff]
    %v1180 = vld [vmem:[%s5 + $0x338] sm:$0xff]
    %v1181 = vld [vmem:[%s5 + $0x340] sm:$0xff]
    %v1182 = vld [vmem:[%s5 + $0x348] sm:$0xff]
    %v1183 = vld [vmem:[%s5 + $0x350] sm:$0xff]
    %v1184 = vld [vmem:[%s5 + $0x358] sm:$0xff]
    %v1185 = vld [vmem:[%s5 + $0x360] sm:$0xff]
    %v1186 = vld [vmem:[%s5 + $0x368] sm:$0xff]
    %v1187 = vld [vmem:[%s5 + $0x370] sm:$0xff]
    %v1188 = vld [vmem:[%s5 + $0x378] sm:$0xff]
    %v1189 = vld [vmem:[%s5 + $0x380] sm:$0xff]
    %v1190 = vld [vmem:[%s5 + $0x388] sm:$0xff]
    %v1191 = vld [vmem:[%s5 + $0x390] sm:$0xff]
    %v1192 = vld [vmem:[%s5 + $0x398] sm:$0xff]
    %v1193 = vld [vmem:[%s5 + $0x3a0] sm:$0xff]
    %v1194 = vld [vmem:[%s5 + $0x3a8] sm:$0xff]
    %v1195 = vld [vmem:[%s5 + $0x3b0] sm:$0xff]
    %v1196 = vld [vmem:[%s5 + $0x3b8] sm:$0xff]
    %v1197 = vld [vmem:[%s5 + $0x3c0] sm:$0xff]
    %v1198 = vld [vmem:[%s5 + $0x3c8] sm:$0xff]
    %v1199 = vld [vmem:[%s5 + $0x3d0] sm:$0xff]
    %v1200 = vld [vmem:[%s5 + $0x3d8] sm:$0xff]
    %v1201 = vld [vmem:[%s5 + $0x3e0] sm:$0xff]
    %v1202 = vld [vmem:[%s5 + $0x3e8] sm:$0xff]
    %v1203 = vld [vmem:[%s5 + $0x3f0] sm:$0xff]
    %v1204 = vld [vmem:[%s5 + $0x3f8] sm:$0xff]
    %v1205 = vld [vmem:[%s5 + $0x400] sm:$0xff]
    %v1206 = vld [vmem:[%s5 + $0x408] sm:$0xff]
    %v1207 = vld [vmem:[%s5 + $0x410] sm:$0xff]
    %v1208 = vld [vmem:[%s5 + $0x418] sm:$0xff]
    %v1209 = vld [vmem:[%s5 + $0x420] sm:$0xff]
    %v1210 = vld [vmem:[%s5 + $0x428] sm:$0xff]
    %v1211 = vld [vmem:[%s5 + $0x430] sm:$0xff]
    %v1212 = vld [vmem:[%s5 + $0x438] sm:$0xff]
    %v1213 = vld [vmem:[%s5 + $0x440] sm:$0xff]
    %v1214 = vld [vmem:[%s5 + $0x448] sm:$0xff]
    %v1215 = vld [vmem:[%s5 + $0x450] sm:$0xff]
    %v1216 = vld [vmem:[%s5 + $0x458] sm:$0xff]
    %v1217 = vld [vmem:[%s5 + $0x460] sm:$0xff]
    %v1218 = vld [vmem:[%s5 + $0x468] sm:$0xff]
    %v1219 = vld [vmem:[%s5 + $0x470] sm:$0xff]
    %v1220 = vld [vmem:[%s5 + $0x478] sm:$0xff]
    %v1221 = vld [vmem:[%s5 + $0x480] sm:$0xff]
    %v1222 = vld [vmem:[%s5 + $0x488] sm:$0xff]
    %v1223 = vld [vmem:[%s5 + $0x490] sm:$0xff]
    %v1224 = vld [vmem:[%s5 + $0x498] sm:$0xff]
    %v1225 = vld [vmem:[%s5 + $0x4a0] sm:$0xff]
    %v1226 = vld [vmem:[%s5 + $0x4a8] sm:$0xff]
    %v1227 = vld [vmem:[%s5 + $0x4b0] sm:$0xff]
    %v1228 = vld [vmem:[%s5 + $0x4b8] sm:$0xff]
    %v1229 = vld [vmem:[%s5 + $0x4c0] sm:$0xff]
    %v1230 = vld [vmem:[%s5 + $0x4c8] sm:$0xff]
    %v1231 = vld [vmem:[%s5 + $0x4d0] sm:$0xff]
    %v1232 = vld [vmem:[%s5 + $0x4d8] sm:$0xff]
    %v1233 = vld [vmem:[%s5 + $0x4e0] sm:$0xff]
    %v1234 = vld [vmem:[%s5 + $0x4e8] sm:$0xff]
    %v1235 = vld [vmem:[%s5 + $0x4f0] sm:$0xff]
    %v1236 = vld [vmem:[%s5 + $0x4f8] sm:$0xff]
    %v1237 = vld [vmem:[%s6] sm:$0x3]
    %v1239 = vlaneseq
    %v1240 = vshrl.u32 %v1239, 7
    %v1241 = vsub.s32 0, %v1240
    %v1242 = vrot.slane %v1237, %v1241
    %v1243 = vlaneseq
    %v1244 = vshrl.u32 %v1243, 7
    %v1245 = vsub.s32 1, %v1244
    %v1246 = vrot.slane %v1237, %v1245
    %1249 = vmatprep.subr.mxu0 %v1078
    %1250 = vmatpush1.msra.mxu0 %v1077
    %1251 = vmatprep.subr.mxu0 %v1080
    %1252 = vmatpush1.msra.mxu0 %v1079
    %1253 = vmatprep.subr.mxu0 %v1082
    %1254 = vmatpush1.msra.mxu0 %v1081
    %1255 = vmatprep.subr.mxu0 %v1084
    %1256 = vmatpush1.msra.mxu0 %v1083
    %1257 = vmatprep.subr.mxu0 %v1086
    %1258 = vmatpush1.msra.mxu0 %v1085
    %1259 = vmatprep.subr.mxu0 %v1088
    %1260 = vmatpush1.msra.mxu0 %v1087
    %1261 = vmatprep.subr.mxu0 %v1090
    %1262 = vmatpush1.msra.mxu0 %v1089
    %1263 = vmatprep.subr.mxu0 %v1092
    %1264 = vmatpush1.msra.mxu0 %v1091
    %1265 = vmatprep.subr.mxu0 %v1094
    %1266 = vmatpush1.msra.mxu0 %v1093
    %1267 = vmatprep.subr.mxu0 %v1096
    %1268 = vmatpush1.msra.mxu0 %v1095
    %1269 = vmatprep.subr.mxu0 %v1098
    %1270 = vmatpush1.msra.mxu0 %v1097
    %1271 = vmatprep.subr.mxu0 %v1100
    %1272 = vmatpush1.msra.mxu0 %v1099
    %1273 = vmatprep.subr.mxu0 %v1102
    %1274 = vmatpush1.msra.mxu0 %v1101
    %1275 = vmatprep.subr.mxu0 %v1104
    %1276 = vmatpush1.msra.mxu0 %v1103
    %1277 = vmatprep.subr.mxu0 %v1106
    %1278 = vmatpush1.msra.mxu0 %v1105
    %1279 = vmatprep.subr.mxu0 %v1108
    %1280 = vmatpush1.msra.mxu0 %v1107
    %1281 = vmatprep.subr.mxu0 %v1110
    %1282 = vmatpush1.msra.mxu0 %v1109
    %1283 = vmatprep.subr.mxu0 %v1112
    %1284 = vmatpush1.msra.mxu0 %v1111
    %1285 = vmatprep.subr.mxu0 %v1114
    %1286 = vmatpush1.msra.mxu0 %v1113
    %1287 = vmatprep.subr.mxu0 %v1116
    %1288 = vmatpush1.msra.mxu0 %v1115
    %1289 = vmatprep.subr.mxu0 %v1118
    %1290 = vmatpush1.msra.mxu0 %v1117
    %1291 = vmatprep.subr.mxu0 %v1120
    %1292 = vmatpush1.msra.mxu0 %v1119
    %1293 = vmatprep.subr.mxu0 %v1122
    %1294 = vmatpush1.msra.mxu0 %v1121
    %1295 = vmatprep.subr.mxu0 %v1124
    %1296 = vmatpush1.msra.mxu0 %v1123
    %1297 = vmatprep.subr.mxu0 %v1126
    %1298 = vmatpush1.msra.mxu0 %v1125
    %1299 = vmatprep.subr.mxu0 %v1128
    %1300 = vmatpush1.msra.mxu0 %v1127
    %1301 = vmatprep.subr.mxu0 %v1130
    %1302 = vmatpush1.msra.mxu0 %v1129
    %1303 = vmatprep.subr.mxu0 %v1132
    %1304 = vmatpush1.msra.mxu0 %v1131
    %1305 = vmatprep.subr.mxu0 %v1134
    %1306 = vmatpush1.msra.mxu0 %v1133
    %1307 = vmatprep.subr.mxu0 %v1136
    %1308 = vmatpush1.msra.mxu0 %v1135
    %1309 = vmatprep.subr.mxu0 %v1138
    %1310 = vmatpush1.msra.mxu0 %v1137
    %1311 = vmatprep.subr.mxu0 %v1140
    %1312 = vmatpush1.msra.mxu0 %v1139
    %1313 = vmatprep.mubr.f32.mxu0 %v1063
    %1314 = vmatmul.mubr.f32.gmra.mrb[0].mxu0 %v1062
    %v1315 = vpop.f32.mrb[0].mxu0
    %v1316 = vadd.f32 %v1242, %v1315
    %v1317 = vpop.f32.mrb[0].mxu0
    %v1318 = vadd.f32 %v1246, %v1317
    %1319 = vmatprep.mubr.f32.mxu0 %v1068
    %1320 = vmatmul.mubr.f32.gmra.mrb[0].mxu0 %v1067
    %v1321 = vpop.f32.mrb[0].mxu0
    %v1322 = vadd.f32 %v1242, %v1321
    %v1323 = vpop.f32.mrb[0].mxu0
    %v1324 = vadd.f32 %v1246, %v1323
    %1325 = vmatprep.mubr.f32.mxu0 %v1073
    %1326 = vmatmul.mubr.f32.gmra.mrb[0].mxu0 %v1072
    %v1327 = vpop.f32.mrb[0].mxu0
    %v1328 = vadd.f32 %v1242, %v1327
    %v1329 = vpop.f32.mrb[0].mxu0
    %v1330 = vadd.f32 %v1246, %v1329
    %1331 = vdwg.mxu0
    %1332 = vmatprep.subr.mxu0 %v1142
    %1333 = vmatpush1.msra.mxu0 %v1141
    %1334 = vmatprep.subr.mxu0 %v1144
    %1335 = vmatpush1.msra.mxu0 %v1143
    %1336 = vmatprep.subr.mxu0 %v1146
    %1337 = vmatpush1.msra.mxu0 %v1145
    %1338 = vmatprep.subr.mxu0 %v1148
    %1339 = vmatpush1.msra.mxu0 %v1147
    %1340 = vmatprep.subr.mxu0 %v1150
    %1341 = vmatpush1.msra.mxu0 %v1149
    %1342 = vmatprep.subr.mxu0 %v1152
    %1343 = vmatpush1.msra.mxu0 %v1151
    %1344 = vmatprep.subr.mxu0 %v1154
    %1345 = vmatpush1.msra.mxu0 %v1153
    %1346 = vmatprep.subr.mxu0 %v1156
    %1347 = vmatpush1.msra.mxu0 %v1155
    %1348 = vmatprep.subr.mxu0 %v1158
    %1349 = vmatpush1.msra.mxu0 %v1157
    %1350 = vmatprep.subr.mxu0 %v1160
    %1351 = vmatpush1.msra.mxu0 %v1159
    %1352 = vmatprep.subr.mxu0 %v1162
    %1353 = vmatpush1.msra.mxu0 %v1161
    %1354 = vmatprep.subr.mxu0 %v1164
    %1355 = vmatpush1.msra.mxu0 %v1163
    %1356 = vmatprep.subr.mxu0 %v1166
    %1357 = vmatpush1.msra.mxu0 %v1165
    %1358 = vmatprep.subr.mxu0 %v1168
    %1359 = vmatpush1.msra.mxu0 %v1167
    %1360 = vmatprep.subr.mxu0 %v1170
    %1361 = vmatpush1.msra.mxu0 %v1169
    %1362 = vmatprep.subr.mxu0 %v1172
    %1363 = vmatpush1.msra.mxu0 %v1171
    %1364 = vmatprep.subr.mxu0 %v1174
    %1365 = vmatpush1.msra.mxu0 %v1173
    %1366 = vmatprep.subr.mxu0 %v1176
    %1367 = vmatpush1.msra.mxu0 %v1175
    %1368 = vmatprep.subr.mxu0 %v1178
    %1369 = vmatpush1.msra.mxu0 %v1177
    %1370 = vmatprep.subr.mxu0 %v1180
    %1371 = vmatpush1.msra.mxu0 %v1179
    %1372 = vmatprep.subr.mxu0 %v1182
    %1373 = vmatpush1.msra.mxu0 %v1181
    %1374 = vmatprep.subr.mxu0 %v1184
    %1375 = vmatpush1.msra.mxu0 %v1183
    %1376 = vmatprep.subr.mxu0 %v1186
    %1377 = vmatpush1.msra.mxu0 %v1185
    %1378 = vmatprep.subr.mxu0 %v1188
    %1379 = vmatpush1.msra.mxu0 %v1187
    %1380 = vmatprep.subr.mxu0 %v1190
    %1381 = vmatpush1.msra.mxu0 %v1189
    %1382 = vmatprep.subr.mxu0 %v1192
    %1383 = vmatpush1.msra.mxu0 %v1191
    %1384 = vmatprep.subr.mxu0 %v1194
    %1385 = vmatpush1.msra.mxu0 %v1193
    %1386 = vmatprep.subr.mxu0 %v1196
    %1387 = vmatpush1.msra.mxu0 %v1195
    %1388 = vmatprep.subr.mxu0 %v1198
    %1389 = vmatpush1.msra.mxu0 %v1197
    %1390 = vmatprep.subr.mxu0 %v1200
    %1391 = vmatpush1.msra.mxu0 %v1199
    %1392 = vmatprep.subr.mxu0 %v1202
    %1393 = vmatpush1.msra.mxu0 %v1201
    %1394 = vmatprep.subr.mxu0 %v1204
    %1395 = vmatpush1.msra.mxu0 %v1203
    %1396 = vmatprep.mubr.f32.mxu0 %v1065
    %1397 = vmatmul.mubr.f32.gmra.mrb[0].mxu0 %v1064
    %v1398 = vpop.f32.mrb[0].mxu0
    %v1399 = vadd.f32 %v1316, %v1398
    %v1400 = vpop.f32.mrb[0].mxu0
    %v1401 = vadd.f32 %v1318, %v1400
    %1402 = vmatprep.mubr.f32.mxu0 %v1070
    %1403 = vmatmul.mubr.f32.gmra.mrb[0].mxu0 %v1069
    %v1404 = vpop.f32.mrb[0].mxu0
    %v1405 = vadd.f32 %v1322, %v1404
    %v1406 = vpop.f32.mrb[0].mxu0
    %v1407 = vadd.f32 %v1324, %v1406
    %1408 = vmatprep.mubr.f32.mxu0 %v1075
    %1409 = vmatmul.mubr.f32.gmra.mrb[0].mxu0 %v1074
    %v1410 = vpop.f32.mrb[0].mxu0
    %v1411 = vadd.f32 %v1328, %v1410
    %v1412 = vpop.f32.mrb[0].mxu0
    %v1413 = vadd.f32 %v1330, %v1412
    %1414 = vdwg.mxu0
    %1415 = vmatprep.subr.mxu0 %v1206
    %1416 = vmatpush1.msra.mxu0 %v1205
    %1417 = vmatprep.subr.mxu0 %v1208
    %1418 = vmatpush1.msra.mxu0 %v1207
    %1419 = vmatprep.subr.mxu0 %v1210
    %1420 = vmatpush1.msra.mxu0 %v1209
    %1421 = vmatprep.subr.mxu0 %v1212
    %1422 = vmatpush1.msra.mxu0 %v1211
    %1423 = vmatprep.subr.mxu0 %v1214
    %1424 = vmatpush1.msra.mxu0 %v1213
    %1425 = vmatprep.subr.mxu0 %v1216
    %1426 = vmatpush1.msra.mxu0 %v1215
    %1427 = vmatprep.subr.mxu0 %v1218
    %1428 = vmatpush1.msra.mxu0 %v1217
    %1429 = vmatprep.subr.mxu0 %v1220
    %1430 = vmatpush1.msra.mxu0 %v1219
    %1431 = vmatprep.subr.mxu0 %v1222
    %1432 = vmatpush1.msra.mxu0 %v1221
    %1433 = vmatprep.subr.mxu0 %v1224
    %1434 = vmatpush1.msra.mxu0 %v1223
    %1435 = vmatprep.subr.mxu0 %v1226
    %1436 = vmatpush1.msra.mxu0 %v1225
    %1437 = vmatprep.subr.mxu0 %v1228
    %1438 = vmatpush1.msra.mxu0 %v1227
    %1439 = vmatprep.subr.mxu0 %v1230
    %1440 = vmatpush1.msra.mxu0 %v1229
    %1441 = vmatprep.subr.mxu0 %v1232
    %1442 = vmatpush1.msra.mxu0 %v1231
    %1443 = vmatprep.subr.mxu0 %v1234
    %1444 = vmatpush1.msra.mxu0 %v1233
    %1445 = vmatprep.subr.mxu0 %v1236
    %1446 = vmatpush1.msra.mxu0 %v1235
    %1447 = vmatprep.subr.mxu0 0.0
    %1448 = vmatpush1.msra.mxu0 0.0
    %1449 = vmatprep.subr.mxu0 0.0
    %1450 = vmatpush1.msra.mxu0 0.0
    %1451 = vmatprep.subr.mxu0 0.0
    %1452 = vmatpush1.msra.mxu0 0.0
    %1453 = vmatprep.subr.mxu0 0.0
    %1454 = vmatpush1.msra.mxu0 0.0
    %1455 = vmatprep.subr.mxu0 0.0
    %1456 = vmatpush1.msra.mxu0 0.0
    %1457 = vmatprep.subr.mxu0 0.0
    %1458 = vmatpush1.msra.mxu0 0.0
    %1459 = vmatprep.subr.mxu0 0.0
    %1460 = vmatpush1.msra.mxu0 0.0
    %1461 = vmatprep.subr.mxu0 0.0
    %1462 = vmatpush1.msra.mxu0 0.0
    %1463 = vmatprep.subr.mxu0 0.0
    %1464 = vmatpush1.msra.mxu0 0.0
    %1465 = vmatprep.subr.mxu0 0.0
    %1466 = vmatpush1.msra.mxu0 0.0
    %1467 = vmatprep.subr.mxu0 0.0
    %1468 = vmatpush1.msra.mxu0 0.0
    %1469 = vmatprep.subr.mxu0 0.0
    %1470 = vmatpush1.msra.mxu0 0.0
    %1471 = vmatprep.subr.mxu0 0.0
    %1472 = vmatpush1.msra.mxu0 0.0
    %1473 = vmatprep.subr.mxu0 0.0
    %1474 = vmatpush1.msra.mxu0 0.0
    %1475 = vmatprep.subr.mxu0 0.0
    %1476 = vmatpush1.msra.mxu0 0.0
    %1477 = vmatprep.subr.mxu0 0.0
    %1478 = vmatpush1.msra.mxu0 0.0
    %1479 = vmatprep.mubr.f32.mxu0 0.0
    %1480 = vmatmul.mubr.f32.gmra.mrb[0].mxu0 %v1066
    %v1481 = vpop.f32.mrb[0].mxu0
    %v1482 = vadd.f32 %v1399, %v1481
    %v1483 = vpop.f32.mrb[0].mxu0
    %v1484 = vadd.f32 %v1401, %v1483
    %1485 = vmatprep.mubr.f32.mxu0 0.0
    %1486 = vmatmul.mubr.f32.gmra.mrb[0].mxu0 %v1071
    %v1487 = vpop.f32.mrb[0].mxu0
    %v1488 = vadd.f32 %v1405, %v1487
    %v1489 = vpop.f32.mrb[0].mxu0
    %v1490 = vadd.f32 %v1407, %v1489
    %1491 = vmatprep.mubr.f32.mxu0 0.0
    %1492 = vmatmul.mubr.f32.gmra.mrb[0].mxu0 %v1076
    %v1493 = vpop.f32.mrb[0].mxu0
    %v1494 = vadd.f32 %v1411, %v1493
    %v1495 = vpop.f32.mrb[0].mxu0
    %v1496 = vadd.f32 %v1413, %v1495
    %1497 = vdwg.mxu0
    %v1498 = vld [vmem:[%s7] sm:$0xff]
    %vm1499 = vcmask 195584
    %v1501 = vsel %vm1499, %v1498, 0
    %1503 = vmatprep.subr.mxu0 %v1484
    %1504 = vmatpush1.msra.mxu0 %v1482
    %1505 = vmatprep.subr.mxu0 %v1490
    %1506 = vmatpush1.msra.mxu0 %v1488
    %1507 = vmatprep.subr.mxu0 %v1496
    %1508 = vmatpush1.msra.mxu0 %v1494
    %1509 = vmatprep.subr.mxu0 0.0
    %1510 = vmatpush1.msra.mxu0 0.0
    %1511 = vmatprep.subr.mxu0 0.0
    %1512 = vmatpush1.msra.mxu0 0.0
    %1513 = vmatprep.subr.mxu0 0.0
    %1514 = vmatpush1.msra.mxu0 0.0
    %1515 = vmatprep.subr.mxu0 0.0
    %1516 = vmatpush1.msra.mxu0 0.0
    %1517 = vmatprep.subr.mxu0 0.0
    %1518 = vmatpush1.msra.mxu0 0.0
    %1519 = vmatprep.subr.mxu0 0.0
    %1520 = vmatpush1.msra.mxu0 0.0
    %1521 = vmatprep.subr.mxu0 0.0
    %1522 = vmatpush1.msra.mxu0 0.0
    %1523 = vmatprep.subr.mxu0 0.0
    %1524 = vmatpush1.msra.mxu0 0.0
    %1525 = vmatprep.subr.mxu0 0.0
    %1526 = vmatpush1.msra.mxu0 0.0
    %1527 = vmatprep.subr.mxu0 0.0
    %1528 = vmatpush1.msra.mxu0 0.0
    %1529 = vmatprep.subr.mxu0 0.0
    %1530 = vmatpush1.msra.mxu0 0.0
    %1531 = vmatprep.subr.mxu0 0.0
    %1532 = vmatpush1.msra.mxu0 0.0
    %1533 = vmatprep.subr.mxu0 0.0
    %1534 = vmatpush1.msra.mxu0 0.0
    %1535 = vmatprep.subr.mxu0 0.0
    %1536 = vmatpush1.msra.mxu0 0.0
    %1537 = vmatprep.subr.mxu0 0.0
    %1538 = vmatpush1.msra.mxu0 0.0
    %1539 = vmatprep.subr.mxu0 0.0
    %1540 = vmatpush1.msra.mxu0 0.0
    %1541 = vmatprep.subr.mxu0 0.0
    %1542 = vmatpush1.msra.mxu0 0.0
    %1543 = vmatprep.subr.mxu0 0.0
    %1544 = vmatpush1.msra.mxu0 0.0
    %1545 = vmatprep.subr.mxu0 0.0
    %1546 = vmatpush1.msra.mxu0 0.0
    %1547 = vmatprep.subr.mxu0 0.0
    %1548 = vmatpush1.msra.mxu0 0.0
    %1549 = vmatprep.subr.mxu0 0.0
    %1550 = vmatpush1.msra.mxu0 0.0
    %1551 = vmatprep.subr.mxu0 0.0
    %1552 = vmatpush1.msra.mxu0 0.0
    %1553 = vmatprep.subr.mxu0 0.0
    %1554 = vmatpush1.msra.mxu0 0.0
    %1555 = vmatprep.subr.mxu0 0.0
    %1556 = vmatpush1.msra.mxu0 0.0
    %1557 = vmatprep.subr.mxu0 0.0
    %1558 = vmatpush1.msra.mxu0 0.0
    %1559 = vmatprep.subr.mxu0 0.0
    %1560 = vmatpush1.msra.mxu0 0.0
    %1561 = vmatprep.subr.mxu0 0.0
    %1562 = vmatpush1.msra.mxu0 0.0
    %1563 = vmatprep.subr.mxu0 0.0
    %1564 = vmatpush1.msra.mxu0 0.0
    %1565 = vmatprep.subr.mxu0 0.0
    %1566 = vmatpush1.msra.mxu0 0.0
    %1567 = vmatprep.mubr.f32.mxu0 0.0
    %1568 = vmatmul.mubr.f32.gmra.mrb[0].mxu0 %v1501
    %v1569 = vpop.f32.mrb[0].mxu0
    %v1570 = vadd.f32 0.0, %v1569
    %v1571 = vpop.f32.mrb[0].mxu0
    %v1572 = vadd.f32 0.0, %v1571
    %1573 = vdwg.mxu0
    %s1574 = scalar_lea.vmem %s7, 8
    %v1575 = vld [vmem:[%s1574] sm:$0xff]
    %v1577 = vsel %vm1499, %v1575, 0
    %1579 = vmatprep.subr.mxu0 %v1484
    %1580 = vmatpush1.msra.mxu0 %v1482
    %1581 = vmatprep.subr.mxu0 %v1490
    %1582 = vmatpush1.msra.mxu0 %v1488
    %1583 = vmatprep.subr.mxu0 %v1496
    %1584 = vmatpush1.msra.mxu0 %v1494
    %1585 = vmatprep.subr.mxu0 0.0
    %1586 = vmatpush1.msra.mxu0 0.0
    %1587 = vmatprep.subr.mxu0 0.0
    %1588 = vmatpush1.msra.mxu0 0.0
    %1589 = vmatprep.subr.mxu0 0.0
    %1590 = vmatpush1.msra.mxu0 0.0
    %1591 = vmatprep.subr.mxu0 0.0
    %1592 = vmatpush1.msra.mxu0 0.0
    %1593 = vmatprep.subr.mxu0 0.0
    %1594 = vmatpush1.msra.mxu0 0.0
    %1595 = vmatprep.subr.mxu0 0.0
    %1596 = vmatpush1.msra.mxu0 0.0
    %1597 = vmatprep.subr.mxu0 0.0
    %1598 = vmatpush1.msra.mxu0 0.0
    %1599 = vmatprep.subr.mxu0 0.0
    %1600 = vmatpush1.msra.mxu0 0.0
    %1601 = vmatprep.subr.mxu0 0.0
    %1602 = vmatpush1.msra.mxu0 0.0
    %1603 = vmatprep.subr.mxu0 0.0
    %1604 = vmatpush1.msra.mxu0 0.0
    %1605 = vmatprep.subr.mxu0 0.0
    %1606 = vmatpush1.msra.mxu0 0.0
    %1607 = vmatprep.subr.mxu0 0.0
    %1608 = vmatpush1.msra.mxu0 0.0
    %1609 = vmatprep.subr.mxu0 0.0
    %1610 = vmatpush1.msra.mxu0 0.0
    %1611 = vmatprep.subr.mxu0 0.0
    %1612 = vmatpush1.msra.mxu0 0.0
    %1613 = vmatprep.subr.mxu0 0.0
    %1614 = vmatpush1.msra.mxu0 0.0
    %1615 = vmatprep.subr.mxu0 0.0
    %1616 = vmatpush1.msra.mxu0 0.0
    %1617 = vmatprep.subr.mxu0 0.0
    %1618 = vmatpush1.msra.mxu0 0.0
    %1619 = vmatprep.subr.mxu0 0.0
    %1620 = vmatpush1.msra.mxu0 0.0
    %1621 = vmatprep.subr.mxu0 0.0
    %1622 = vmatpush1.msra.mxu0 0.0
    %1623 = vmatprep.subr.mxu0 0.0
    %1624 = vmatpush1.msra.mxu0 0.0
    %1625 = vmatprep.subr.mxu0 0.0
    %1626 = vmatpush1.msra.mxu0 0.0
    %1627 = vmatprep.subr.mxu0 0.0
    %1628 = vmatpush1.msra.mxu0 0.0
    %1629 = vmatprep.subr.mxu0 0.0
    %1630 = vmatpush1.msra.mxu0 0.0
    %1631 = vmatprep.subr.mxu0 0.0
    %1632 = vmatpush1.msra.mxu0 0.0
    %1633 = vmatprep.subr.mxu0 0.0
    %1634 = vmatpush1.msra.mxu0 0.0
    %1635 = vmatprep.subr.mxu0 0.0
    %1636 = vmatpush1.msra.mxu0 0.0
    %1637 = vmatprep.subr.mxu0 0.0
    %1638 = vmatpush1.msra.mxu0 0.0
    %1639 = vmatprep.subr.mxu0 0.0
    %1640 = vmatpush1.msra.mxu0 0.0
    %1641 = vmatprep.subr.mxu0 0.0
    %1642 = vmatpush1.msra.mxu0 0.0
    %1643 = vmatprep.mubr.f32.mxu0 0.0
    %1644 = vmatmul.mubr.f32.gmra.mrb[0].mxu0 %v1577
    %v1645 = vpop.f32.mrb[0].mxu0
    %v1646 = vadd.f32 0.0, %v1645
    %v1647 = vpop.f32.mrb[0].mxu0
    %v1648 = vadd.f32 0.0, %v1647
    %1649 = vdwg.mxu0
    %v1650 = vmax.f32 %v1570, %v1646
    %v1651 = vmax.f32 %v1572, %v1648
    %v1652 = vld [vmem:[%s8] sm:$0xff]
    %v1653 = vld [vmem:[%s8 + $0x8] sm:$0xff]
    %v1654 = vld [vmem:[%s8 + $0x10] sm:$0xff]
    %v1655 = vld [vmem:[%s8 + $0x18] sm:$0xff]
    %v1656 = vld [vmem:[%s8 + $0x20] sm:$0xff]
    %v1657 = vld [vmem:[%s8 + $0x28] sm:$0xff]
    %v1658 = vld [vmem:[%s8 + $0x30] sm:$0xff]
    %v1659 = vld [vmem:[%s8 + $0x38] sm:$0xff]
    %v1660 = vld [vmem:[%s8 + $0x40] sm:$0xff]
    %v1661 = vld [vmem:[%s8 + $0x48] sm:$0xff]
    %v1662 = vld [vmem:[%s8 + $0x50] sm:$0xff]
    %v1663 = vld [vmem:[%s8 + $0x58] sm:$0xff]
    %v1664 = vld [vmem:[%s8 + $0x60] sm:$0xff]
    %v1665 = vld [vmem:[%s8 + $0x68] sm:$0xff]
    %v1666 = vld [vmem:[%s8 + $0x70] sm:$0xff]
    %v1667 = vld [vmem:[%s8 + $0x78] sm:$0xff]
    %v1668 = vld [vmem:[%s8 + $0x80] sm:$0xff]
    %v1669 = vld [vmem:[%s8 + $0x88] sm:$0xff]
    %vm1670 = vcmask 130048
    %v1672 = vsel %vm1670, %v1651, 0
    %1674 = vmatprep.subr.mxu0 0.0
    %1675 = vmatpush1.msra.mxu0 %v1652
    %1676 = vmatprep.subr.mxu0 0.0
    %1677 = vmatpush1.msra.mxu0 %v1653
    %1678 = vmatprep.subr.mxu0 0.0
    %1679 = vmatpush1.msra.mxu0 %v1654
    %1680 = vmatprep.subr.mxu0 0.0
    %1681 = vmatpush1.msra.mxu0 %v1655
    %1682 = vmatprep.subr.mxu0 0.0
    %1683 = vmatpush1.msra.mxu0 %v1656
    %1684 = vmatprep.subr.mxu0 0.0
    %1685 = vmatpush1.msra.mxu0 %v1657
    %1686 = vmatprep.subr.mxu0 0.0
    %1687 = vmatpush1.msra.mxu0 %v1658
    %1688 = vmatprep.subr.mxu0 0.0
    %1689 = vmatpush1.msra.mxu0 %v1659
    %1690 = vmatprep.subr.mxu0 0.0
    %1691 = vmatpush1.msra.mxu0 %v1660
    %1692 = vmatprep.subr.mxu0 0.0
    %1693 = vmatpush1.msra.mxu0 %v1661
    %1694 = vmatprep.subr.mxu0 0.0
    %1695 = vmatpush1.msra.mxu0 %v1662
    %1696 = vmatprep.subr.mxu0 0.0
    %1697 = vmatpush1.msra.mxu0 %v1663
    %1698 = vmatprep.subr.mxu0 0.0
    %1699 = vmatpush1.msra.mxu0 %v1664
    %1700 = vmatprep.subr.mxu0 0.0
    %1701 = vmatpush1.msra.mxu0 %v1665
    %1702 = vmatprep.subr.mxu0 0.0
    %1703 = vmatpush1.msra.mxu0 %v1666
    %1704 = vmatprep.subr.mxu0 0.0
    %1705 = vmatpush1.msra.mxu0 %v1667
    %1706 = vmatprep.subr.mxu0 0.0
    %1707 = vmatpush1.msra.mxu0 %v1668
    %1708 = vmatprep.subr.mxu0 0.0
    %1709 = vmatpush1.msra.mxu0 %v1669
    %1710 = vmatprep.subr.mxu0 0.0
    %1711 = vmatpush1.msra.mxu0 0.0
    %1712 = vmatprep.subr.mxu0 0.0
    %1713 = vmatpush1.msra.mxu0 0.0
    %1714 = vmatprep.subr.mxu0 0.0
    %1715 = vmatpush1.msra.mxu0 0.0
    %1716 = vmatprep.subr.mxu0 0.0
    %1717 = vmatpush1.msra.mxu0 0.0
    %1718 = vmatprep.subr.mxu0 0.0
    %1719 = vmatpush1.msra.mxu0 0.0
    %1720 = vmatprep.subr.mxu0 0.0
    %1721 = vmatpush1.msra.mxu0 0.0
    %1722 = vmatprep.subr.mxu0 0.0
    %1723 = vmatpush1.msra.mxu0 0.0
    %1724 = vmatprep.subr.mxu0 0.0
    %1725 = vmatpush1.msra.mxu0 0.0
    %1726 = vmatprep.subr.mxu0 0.0
    %1727 = vmatpush1.msra.mxu0 0.0
    %1728 = vmatprep.subr.mxu0 0.0
    %1729 = vmatpush1.msra.mxu0 0.0
    %1730 = vmatprep.subr.mxu0 0.0
    %1731 = vmatpush1.msra.mxu0 0.0
    %1732 = vmatprep.subr.mxu0 0.0
    %1733 = vmatpush1.msra.mxu0 0.0
    %1734 = vmatprep.subr.mxu0 0.0
    %1735 = vmatpush1.msra.mxu0 0.0
    %1736 = vmatprep.subr.mxu0 0.0
    %1737 = vmatpush1.msra.mxu0 0.0
    %1738 = vmatprep.mubr.f32.mxu0 %v1672
    %1739 = vmatmul.mubr.f32.gmra.mrb[0].mxu0 %v1650
    %v1740 = vpop.f32.mrb[0].mxu0
    %v1741 = vadd.f32 0.0, %v1740
    %v1742 = vpop.f32.mrb[0].mxu0
    %1743 = vdwg.mxu0
    %s1744 = scalar_lea.vmem %s8, 144
    %v1745 = vld [vmem:[%s1744] sm:$0xff]
    %v1746 = vld [vmem:[%s1744 + $0x8] sm:$0xff]
    %v1747 = vld [vmem:[%s1744 + $0x10] sm:$0xff]
    %v1748 = vld [vmem:[%s1744 + $0x18] sm:$0xff]
    %v1749 = vld [vmem:[%s1744 + $0x20] sm:$0xff]
    %v1750 = vld [vmem:[%s1744 + $0x28] sm:$0xff]
    %v1751 = vld [vmem:[%s1744 + $0x30] sm:$0xff]
    %v1752 = vld [vmem:[%s1744 + $0x38] sm:$0xff]
    %v1753 = vld [vmem:[%s1744 + $0x40] sm:$0xff]
    %v1754 = vld [vmem:[%s1744 + $0x48] sm:$0xff]
    %v1755 = vld [vmem:[%s1744 + $0x50] sm:$0xff]
    %v1756 = vld [vmem:[%s1744 + $0x58] sm:$0xff]
    %v1757 = vld [vmem:[%s1744 + $0x60] sm:$0xff]
    %v1758 = vld [vmem:[%s1744 + $0x68] sm:$0xff]
    %v1759 = vld [vmem:[%s1744 + $0x70] sm:$0xff]
    %v1760 = vld [vmem:[%s1744 + $0x78] sm:$0xff]
    %v1761 = vld [vmem:[%s1744 + $0x80] sm:$0xff]
    %v1762 = vld [vmem:[%s1744 + $0x88] sm:$0xff]
    %1763 = vmatprep.subr.mxu0 0.0
    %1764 = vmatpush1.msra.mxu0 %v1745
    %1765 = vmatprep.subr.mxu0 0.0
    %1766 = vmatpush1.msra.mxu0 %v1746
    %1767 = vmatprep.subr.mxu0 0.0
    %1768 = vmatpush1.msra.mxu0 %v1747
    %1769 = vmatprep.subr.mxu0 0.0
    %1770 = vmatpush1.msra.mxu0 %v1748
    %1771 = vmatprep.subr.mxu0 0.0
    %1772 = vmatpush1.msra.mxu0 %v1749
    %1773 = vmatprep.subr.mxu0 0.0
    %1774 = vmatpush1.msra.mxu0 %v1750
    %1775 = vmatprep.subr.mxu0 0.0
    %1776 = vmatpush1.msra.mxu0 %v1751
    %1777 = vmatprep.subr.mxu0 0.0
    %1778 = vmatpush1.msra.mxu0 %v1752
    %1779 = vmatprep.subr.mxu0 0.0
    %1780 = vmatpush1.msra.mxu0 %v1753
    %1781 = vmatprep.subr.mxu0 0.0
    %1782 = vmatpush1.msra.mxu0 %v1754
    %1783 = vmatprep.subr.mxu0 0.0
    %1784 = vmatpush1.msra.mxu0 %v1755
    %1785 = vmatprep.subr.mxu0 0.0
    %1786 = vmatpush1.msra.mxu0 %v1756
    %1787 = vmatprep.subr.mxu0 0.0
    %1788 = vmatpush1.msra.mxu0 %v1757
    %1789 = vmatprep.subr.mxu0 0.0
    %1790 = vmatpush1.msra.mxu0 %v1758
    %1791 = vmatprep.subr.mxu0 0.0
    %1792 = vmatpush1.msra.mxu0 %v1759
    %1793 = vmatprep.subr.mxu0 0.0
    %1794 = vmatpush1.msra.mxu0 %v1760
    %1795 = vmatprep.subr.mxu0 0.0
    %1796 = vmatpush1.msra.mxu0 %v1761
    %1797 = vmatprep.subr.mxu0 0.0
    %1798 = vmatpush1.msra.mxu0 %v1762
    %1799 = vmatprep.subr.mxu0 0.0
    %1800 = vmatpush1.msra.mxu0 0.0
    %1801 = vmatprep.subr.mxu0 0.0
    %1802 = vmatpush1.msra.mxu0 0.0
    %1803 = vmatprep.subr.mxu0 0.0
    %1804 = vmatpush1.msra.mxu0 0.0
    %1805 = vmatprep.subr.mxu0 0.0
    %1806 = vmatpush1.msra.mxu0 0.0
    %1807 = vmatprep.subr.mxu0 0.0
    %1808 = vmatpush1.msra.mxu0 0.0
    %1809 = vmatprep.subr.mxu0 0.0
    %1810 = vmatpush1.msra.mxu0 0.0
    %1811 = vmatprep.subr.mxu0 0.0
    %1812 = vmatpush1.msra.mxu0 0.0
    %1813 = vmatprep.subr.mxu0 0.0
    %1814 = vmatpush1.msra.mxu0 0.0
    %1815 = vmatprep.subr.mxu0 0.0
    %1816 = vmatpush1.msra.mxu0 0.0
    %1817 = vmatprep.subr.mxu0 0.0
    %1818 = vmatpush1.msra.mxu0 0.0
    %1819 = vmatprep.subr.mxu0 0.0
    %1820 = vmatpush1.msra.mxu0 0.0
    %1821 = vmatprep.subr.mxu0 0.0
    %1822 = vmatpush1.msra.mxu0 0.0
    %1823 = vmatprep.subr.mxu0 0.0
    %1824 = vmatpush1.msra.mxu0 0.0
    %1825 = vmatprep.subr.mxu0 0.0
    %1826 = vmatpush1.msra.mxu0 0.0
    %1827 = vmatprep.mubr.f32.mxu0 %v1672
    %1828 = vmatmul.mubr.f32.gmra.mrb[0].mxu0 %v1650
    %v1829 = vpop.f32.mrb[0].mxu0
    %v1830 = vadd.f32 0.0, %v1829
    %v1831 = vpop.f32.mrb[0].mxu0
    %1832 = vdwg.mxu0
    %v1833 = vmax.f32 %v1741, %v1830
    %1834 = vst [vmem:[#allocation5] sm:$0xff] 0.0
    %1835 = vst [vmem:[#allocation5 + $0x8] sm:$0xff] 0.0
    %vm1836 = vcmask 516096
    %1837 = vst.msk [vmem:[#allocation5] sm:$0x1] %vm1836, %v1833
    %v1839 = vrot.slane %v1833, 1
    %1840 = vrot.lane.b32.xlu0 %v1839, 64
    %v1841 = vpop.permute.xlu0 %1840
    %vm1843 = vcmask 1040896
    %1844 = vst.msk [vmem:[#allocation5] sm:$0x1] %vm1843, %v1841
    %v1845 = vrot.slane %v1833, 2
    %1847 = vst.msk [vmem:[#allocation5 + $0x8] sm:$0x1] %vm1836, %v1845
    %v1848 = vrot.slane %v1833, 3
    %1849 = vrot.lane.b32.xlu0 %v1848, 64
    %v1850 = vpop.permute.xlu0 %1849
    %1852 = vst.msk [vmem:[#allocation5 + $0x8] sm:$0x1] %vm1843, %v1850
    %v1853 = vrot.slane %v1833, 4
    %1855 = vst.msk [vmem:[#allocation5 + $0x1] sm:$0x1] %vm1836, %v1853
    %v1856 = vrot.slane %v1833, 5
    %1857 = vrot.lane.b32.xlu0 %v1856, 64
    %v1858 = vpop.permute.xlu0 %1857
    %1860 = vst.msk [vmem:[#allocation5 + $0x1] sm:$0x1] %vm1843, %v1858
    %v1861 = vrot.slane %v1833, 6
    %1863 = vst.msk [vmem:[#allocation5 + $0x9] sm:$0x1] %vm1836, %v1861
    %v1864 = vrot.slane %v1833, 7
    %1865 = vrot.lane.b32.xlu0 %v1864, 64
    %v1866 = vpop.permute.xlu0 %1865
    %1868 = vst.msk [vmem:[#allocation5 + $0x9] sm:$0x1] %vm1843, %v1866
    %v1869 = vld [vmem:[#allocation5] sm:$0xff]
    %v1870 = vld [vmem:[#allocation5 + $0x8] sm:$0xff]
    %v1871 = vld [vmem:[%s9] sm:$0xff]
    %v1872 = vld [vmem:[%s9 + $0x8] sm:$0xff]
    %v1873 = vld [vmem:[%s9 + $0x10] sm:$0xff]
    %v1874 = vld [vmem:[%s9 + $0x18] sm:$0xff]
    %v1875 = vld [vmem:[%s9 + $0x20] sm:$0xff]
    %v1876 = vld [vmem:[%s9 + $0x28] sm:$0xff]
    %v1877 = vld [vmem:[%s9 + $0x30] sm:$0xff]
    %v1878 = vld [vmem:[%s9 + $0x38] sm:$0xff]
    %v1879 = vld [vmem:[%s9 + $0x40] sm:$0xff]
    %v1880 = vld [vmem:[%s9 + $0x48] sm:$0xff]
    %v1881 = vld [vmem:[%s9 + $0x50] sm:$0xff]
    %v1882 = vld [vmem:[%s9 + $0x58] sm:$0xff]
    %v1883 = vld [vmem:[%s9 + $0x60] sm:$0xff]
    %v1884 = vld [vmem:[%s9 + $0x68] sm:$0xff]
    %v1885 = vld [vmem:[%s9 + $0x70] sm:$0xff]
    %v1886 = vld [vmem:[%s9 + $0x78] sm:$0xff]
    %v1887 = vld [vmem:[%s9 + $0x80] sm:$0xff]
    %v1888 = vld [vmem:[%s9 + $0x88] sm:$0xff]
    %v1889 = vld [vmem:[%s9 + $0x90] sm:$0xff]
    %v1890 = vld [vmem:[%s9 + $0x98] sm:$0xff]
    %v1891 = vld [vmem:[%s9 + $0xa0] sm:$0xff]
    %v1892 = vld [vmem:[%s9 + $0xa8] sm:$0xff]
    %v1893 = vld [vmem:[%s9 + $0xb0] sm:$0xff]
    %v1894 = vld [vmem:[%s9 + $0xb8] sm:$0xff]
    %v1895 = vld [vmem:[%s9 + $0xc0] sm:$0xff]
    %v1896 = vld [vmem:[%s9 + $0xc8] sm:$0xff]
    %v1897 = vld [vmem:[%s9 + $0xd0] sm:$0xff]
    %v1898 = vld [vmem:[%s9 + $0xd8] sm:$0xff]
    %v1899 = vld [vmem:[%s9 + $0xe0] sm:$0xff]
    %v1900 = vld [vmem:[%s9 + $0xe8] sm:$0xff]
    %v1901 = vld [vmem:[%s9 + $0xf0] sm:$0xff]
    %v1902 = vld [vmem:[%s9 + $0xf8] sm:$0xff]
    %v1903 = vld [vmem:[%s10] sm:$0x1]
    %v1905 = vlaneseq
    %v1906 = vshrl.u32 %v1905, 7
    %v1907 = vsub.s32 0, %v1906
    %v1908 = vrot.slane %v1903, %v1907
    %1910 = vmatprep.subr.mxu0 0.0
    %1911 = vmatpush1.msra.mxu0 %v1871
    %1912 = vmatprep.subr.mxu0 0.0
    %1913 = vmatpush1.msra.mxu0 %v1872
    %1914 = vmatprep.subr.mxu0 0.0
    %1915 = vmatpush1.msra.mxu0 %v1873
    %1916 = vmatprep.subr.mxu0 0.0
    %1917 = vmatpush1.msra.mxu0 %v1874
    %1918 = vmatprep.subr.mxu0 0.0
    %1919 = vmatpush1.msra.mxu0 %v1875
    %1920 = vmatprep.subr.mxu0 0.0
    %1921 = vmatpush1.msra.mxu0 %v1876
    %1922 = vmatprep.subr.mxu0 0.0
    %1923 = vmatpush1.msra.mxu0 %v1877
    %1924 = vmatprep.subr.mxu0 0.0
    %1925 = vmatpush1.msra.mxu0 %v1878
    %1926 = vmatprep.subr.mxu0 0.0
    %1927 = vmatpush1.msra.mxu0 %v1879
    %1928 = vmatprep.subr.mxu0 0.0
    %1929 = vmatpush1.msra.mxu0 %v1880
    %1930 = vmatprep.subr.mxu0 0.0
    %1931 = vmatpush1.msra.mxu0 %v1881
    %1932 = vmatprep.subr.mxu0 0.0
    %1933 = vmatpush1.msra.mxu0 %v1882
    %1934 = vmatprep.subr.mxu0 0.0
    %1935 = vmatpush1.msra.mxu0 %v1883
    %1936 = vmatprep.subr.mxu0 0.0
    %1937 = vmatpush1.msra.mxu0 %v1884
    %1938 = vmatprep.subr.mxu0 0.0
    %1939 = vmatpush1.msra.mxu0 %v1885
    %1940 = vmatprep.subr.mxu0 0.0
    %1941 = vmatpush1.msra.mxu0 %v1886
    %1942 = vmatprep.subr.mxu0 0.0
    %1943 = vmatpush1.msra.mxu0 %v1887
    %1944 = vmatprep.subr.mxu0 0.0
    %1945 = vmatpush1.msra.mxu0 %v1888
    %1946 = vmatprep.subr.mxu0 0.0
    %1947 = vmatpush1.msra.mxu0 %v1889
    %1948 = vmatprep.subr.mxu0 0.0
    %1949 = vmatpush1.msra.mxu0 %v1890
    %1950 = vmatprep.subr.mxu0 0.0
    %1951 = vmatpush1.msra.mxu0 %v1891
    %1952 = vmatprep.subr.mxu0 0.0
    %1953 = vmatpush1.msra.mxu0 %v1892
    %1954 = vmatprep.subr.mxu0 0.0
    %1955 = vmatpush1.msra.mxu0 %v1893
    %1956 = vmatprep.subr.mxu0 0.0
    %1957 = vmatpush1.msra.mxu0 %v1894
    %1958 = vmatprep.subr.mxu0 0.0
    %1959 = vmatpush1.msra.mxu0 %v1895
    %1960 = vmatprep.subr.mxu0 0.0
    %1961 = vmatpush1.msra.mxu0 %v1896
    %1962 = vmatprep.subr.mxu0 0.0
    %1963 = vmatpush1.msra.mxu0 %v1897
    %1964 = vmatprep.subr.mxu0 0.0
    %1965 = vmatpush1.msra.mxu0 %v1898
    %1966 = vmatprep.subr.mxu0 0.0
    %1967 = vmatpush1.msra.mxu0 %v1899
    %1968 = vmatprep.subr.mxu0 0.0
    %1969 = vmatpush1.msra.mxu0 %v1900
    %1970 = vmatprep.subr.mxu0 0.0
    %1971 = vmatpush1.msra.mxu0 %v1901
    %1972 = vmatprep.subr.mxu0 0.0
    %1973 = vmatpush1.msra.mxu0 %v1902
    %1974 = vmatprep.mubr.f32.mxu0 %v1870
    %1975 = vmatmul.mubr.f32.gmra.mrb[0].mxu0 %v1869
    %v1976 = vpop.f32.mrb[0].mxu0
    %v1977 = vadd.f32 %v1908, %v1976
    %v1978 = vpop.f32.mrb[0].mxu0
    %1979 = vdwg.mxu0
    %vm1980 = vcmask 74752
    %1981 = vst.msk [vmem:[#allocation6] sm:$0x3] %vm1980, %v1977
    // Predicated region
    $region46: #{lenet5_forward.1} parent=1 // pred_check
      _
    $region47: #{lenet5_forward.1} parent=1 // pred_check_branch
      %1983 = sbr.rel (0) target = $region49
    $region48: #{lenet5_forward.1} parent=1 // pred_region
      %s1985 = ssub.s32 32, 32
      %1986 = vsyncadd [#allocation7], %s1985
      %s1988 = sshll.u32 [#allocation6], 4
      %s1989 = int_to_ptr.vmem [resolvable:$true] %s1988
      %1991 = dma.vmem_to_hbm [thread:$0]  %s1989, 32, %s11, [#allocation7]
    $region49: #{lenet5_forward.1} parent=1 // pred_fallthru
      _
    // Predicated region
    $region50: #{lenet5_forward.1} parent=1 // pred_check
      _
    $region51: #{lenet5_forward.1} parent=1 // pred_check_branch
      %1993 = sbr.rel (0) target = $region53
    $region52: #{lenet5_forward.1} parent=1 // pred_region
      %1994 = dma.done [#allocation7], 32
    $region53: #{lenet5_forward.1} parent=1 // pred_fallthru
      _
    %1995 = vsyncpa [#allocation7], 1

</llo_original>
